<compile_context>
chip_gen: v7x
topology: tpu7x:2x2x1
jax: 0.10.0
libtpu: 0.0.40
codegen_flags: <defaults>
</compile_context>

<pallas_src>
import jax
import jax.numpy as jnp
from jax.experimental import pallas as pl
from jax.experimental.pallas import tpu as pltpu

DIM_Z = 100
DIM_Z_PAD = 128          # pad contraction dim of layer 1 to a lane multiple
HIDDEN = (1024, 512, 256)
C_PAD = 128              # lane-dense output padding (sliced back in wrapper)
BN_EPS = 1e-5


def _bn_relu(y, gamma, beta):
    # Training-mode BatchNorm1d: stats over the batch axis, biased variance,
    # affine folded into a single scale/shift (one fused multiply-add).
    mean = jnp.mean(y, axis=0, keepdims=True)
    var = jnp.mean((y - mean) ** 2, axis=0, keepdims=True)
    scale = gamma * jax.lax.rsqrt(var + BN_EPS)
    shift = beta - mean * scale
    return jnp.maximum(y * scale + shift, 0.0)


def generator_kernel(
    x_ref,
    w1_ref, b1_ref, g1_ref, be1_ref,
    w2_hbm, b2_ref, g2_ref, be2_ref,
    w3_hbm, b3_ref, g3_ref, be3_ref,
    w4_hbm, b4_ref,
    out_ref,
    w2_vmem, w3_vmem, w4_vmem, sem,
):
    # Kick off the later-layer weight DMAs immediately so they overlap with the
    # layer-1 matmul + BN compute.
    cp2 = pltpu.make_async_copy(w2_hbm, w2_vmem, sem.at[0])
    cp2.start()
    cp3 = pltpu.make_async_copy(w3_hbm, w3_vmem, sem.at[1])
    cp3.start()
    cp4 = pltpu.make_async_copy(w4_hbm, w4_vmem, sem.at[2])
    cp4.start()

    x = x_ref[...].astype(jnp.bfloat16)

    # Linear(100 -> 1024) + BN + ReLU   (K padded to 128, padding rows are zero)
    h = jnp.dot(x, w1_ref[...], preferred_element_type=jnp.float32) + b1_ref[...]
    h = _bn_relu(h, g1_ref[...], be1_ref[...])

    # Linear(1024 -> 512) + BN + ReLU
    cp2.wait()
    h = jnp.dot(h.astype(jnp.bfloat16), w2_vmem[...],
                preferred_element_type=jnp.float32) + b2_ref[...]
    h = _bn_relu(h, g2_ref[...], be2_ref[...])

    # Linear(512 -> 256) + BN + ReLU
    cp3.wait()
    h = jnp.dot(h.astype(jnp.bfloat16), w3_vmem[...],
                preferred_element_type=jnp.float32) + b3_ref[...]
    h = _bn_relu(h, g3_ref[...], be3_ref[...])

    # Linear(256 -> channels) + Tanh    (channels zero-padded to 128 lanes)
    cp4.wait()
    y = jnp.dot(h.astype(jnp.bfloat16), w4_vmem[...],
                preferred_element_type=jnp.float32) + b4_ref[...]
    out_ref[...] = jnp.tanh(y)


def generator_forward(x, params, channels):
    """x: [N, DIM_Z] float32; params: dict from init_params (bf16 weights)."""
    n, d = x.shape
    assert d == DIM_Z
    x_pad = jnp.pad(x, ((0, 0), (0, DIM_Z_PAD - DIM_Z)))

    names = ("x", "w1", "b1", "g1", "be1",
             "w2", "b2", "g2", "be2",
             "w3", "b3", "g3", "be3",
             "w4", "b4")
    operands = (
        x_pad,
        params["w1"], params["b1"], params["g1"], params["be1"],
        params["w2"], params["b2"], params["g2"], params["be2"],
        params["w3"], params["b3"], params["g3"], params["be3"],
        params["w4"], params["b4"],
    )

    def vmem_spec(arr):
        nd = arr.ndim
        return pl.BlockSpec(arr.shape, lambda i, _nd=nd: (0,) * _nd)

    manual_dma = ("w2", "w3", "w4")
    in_specs = [
        pl.BlockSpec(memory_space=pl.ANY) if name in manual_dma else vmem_spec(arr)
        for name, arr in zip(names, operands)
    ]
    out_spec = pl.BlockSpec((n, C_PAD), lambda i: (0, 0))

    out = pl.pallas_call(
        generator_kernel,
        out_shape=jax.ShapeDtypeStruct((n, C_PAD), jnp.float32),
        grid_spec=pltpu.PrefetchScalarGridSpec(
            num_scalar_prefetch=0,
            grid=(1,),
            in_specs=in_specs,
            out_specs=out_spec,
            scratch_shapes=[
                pltpu.VMEM((HIDDEN[0], HIDDEN[1]), jnp.bfloat16),   # w2 buffer
                pltpu.VMEM((HIDDEN[1], HIDDEN[2]), jnp.bfloat16),   # w3 buffer
                pltpu.VMEM((HIDDEN[2], C_PAD), jnp.bfloat16),       # w4 buffer
                pltpu.SemaphoreType.DMA((3,)),
            ],
        ),
        compiler_params=pltpu.CompilerParams(
            dimension_semantics=("arbitrary",),
        ),
    )(*operands)
    return out[:, :channels]


def init_params(key, channels):
    """PyTorch-Linear-style uniform(+-1/sqrt(fan_in)) init; weights stored bf16,
    layer-1 weight zero-padded on its input dim, layer-4 on its output dim."""
    dims = (DIM_Z,) + HIDDEN + (channels,)
    params = {}
    for idx in range(4):
        fan_in, fan_out = dims[idx], dims[idx + 1]
        key, kw, kb = jax.random.split(key, 3)
        bound = 1.0 / jnp.sqrt(jnp.float32(fan_in))
        w = jax.random.uniform(kw, (fan_in, fan_out), jnp.float32, -bound, bound)
        b = jax.random.uniform(kb, (1, fan_out), jnp.float32, -bound, bound)
        pad_rows = (DIM_Z_PAD - DIM_Z) if idx == 0 else 0
        pad_cols = (C_PAD - channels) if idx == 3 else 0
        w = jnp.pad(w, ((0, pad_rows), (0, pad_cols)))
        b = jnp.pad(b, ((0, 0), (0, pad_cols)))
        params[f"w{idx + 1}"] = w.astype(jnp.bfloat16)  # halve HBM weight traffic
        params[f"b{idx + 1}"] = b                       # biases / BN stay f32
        if idx < 3:
            params[f"g{idx + 1}"] = jnp.ones((1, fan_out), jnp.float32)
            params[f"be{idx + 1}"] = jnp.zeros((1, fan_out), jnp.float32)
    return params


def reference_forward(x, params, channels):
    """Pure-JAX reference with the same bf16-weight / f32-accumulation math."""
    h = jnp.pad(x, ((0, 0), (0, DIM_Z_PAD - DIM_Z)))
    for idx in range(1, 4):
        h = jnp.dot(h.astype(jnp.bfloat16), params[f"w{idx}"],
                    preferred_element_type=jnp.float32) + params[f"b{idx}"]
        mean = jnp.mean(h, axis=0, keepdims=True)
        var = jnp.mean((h - mean) ** 2, axis=0, keepdims=True)
        h = (h - mean) / jnp.sqrt(var + BN_EPS)
        h = h * params[f"g{idx}"] + params[f"be{idx}"]
        h = jnp.maximum(h, 0.0)
    y = jnp.dot(h.astype(jnp.bfloat16), params["w4"],
                preferred_element_type=jnp.float32) + params["b4"]
    return jnp.tanh(y)[:, :channels]


if __name__ == "__main__":
    channels = 16   # `channels` argument of Generator.__init__
    batch = 8

    key = jax.random.PRNGKey(0)
    key, kx = jax.random.split(key)
    x = jax.random.normal(kx, (batch, DIM_Z), jnp.float32)
    params = init_params(key, channels)

    out = generator_forward(x, params, channels)
    out = jax.block_until_ready(out)

    ref = reference_forward(x, params, channels)
    assert out.shape == (batch, channels)
    assert bool(jnp.allclose(out, ref, atol=2e-2, rtol=2e-2)), "mismatch vs JAX reference"

    print("KERNEL_OK")
</pallas_src>

<mosaic_0001>
module attributes {stable_mosaic.version = 11 : i64} {
  func.func @generator_kernel(%arg0: i32, %arg1: memref<8x128xf32, #tpu.memory_space<vmem>>, %arg2: memref<128x1024xbf16, #tpu.memory_space<vmem>>, %arg3: memref<1x1024xf32, #tpu.memory_space<vmem>>, %arg4: memref<1x1024xf32, #tpu.memory_space<vmem>>, %arg5: memref<1x1024xf32, #tpu.memory_space<vmem>>, %arg6: memref<1024x512xbf16, #tpu.memory_space<any>>, %arg7: memref<1x512xf32, #tpu.memory_space<vmem>>, %arg8: memref<1x512xf32, #tpu.memory_space<vmem>>, %arg9: memref<1x512xf32, #tpu.memory_space<vmem>>, %arg10: memref<512x256xbf16, #tpu.memory_space<any>>, %arg11: memref<1x256xf32, #tpu.memory_space<vmem>>, %arg12: memref<1x256xf32, #tpu.memory_space<vmem>>, %arg13: memref<1x256xf32, #tpu.memory_space<vmem>>, %arg14: memref<256x128xbf16, #tpu.memory_space<any>>, %arg15: memref<1x128xf32, #tpu.memory_space<vmem>>, %arg16: memref<8x128xf32, #tpu.memory_space<vmem>>, %arg17: memref<1024x512xbf16, #tpu.memory_space<vmem>>, %arg18: memref<512x256xbf16, #tpu.memory_space<vmem>>, %arg19: memref<256x128xbf16, #tpu.memory_space<vmem>>, %arg20: memref<3x!tpu.dma_semaphore, #tpu.memory_space<semaphore_mem>>) attributes {dimension_semantics = [#tpu.dimension_semantics<arbitrary>], iteration_bounds = array<i64: 1>, scalar_prefetch = 0 : i64, scratch_operands = 4 : i64, tpu.core_type = #tpu.core_type<tc>, window_params = [{pipeline_mode = #tpu.pipeline_mode<synchronous>, transform_indices = @transform_0, window_bounds = array<i64: 8, 128>}, {pipeline_mode = #tpu.pipeline_mode<synchronous>, transform_indices = @transform_1, window_bounds = array<i64: 128, 1024>}, {pipeline_mode = #tpu.pipeline_mode<synchronous>, transform_indices = @transform_2, window_bounds = array<i64: 1, 1024>}, {pipeline_mode = #tpu.pipeline_mode<synchronous>, transform_indices = @transform_3, window_bounds = array<i64: 1, 1024>}, {pipeline_mode = #tpu.pipeline_mode<synchronous>, transform_indices = @transform_4, window_bounds = array<i64: 1, 1024>}, {}, {pipeline_mode = #tpu.pipeline_mode<synchronous>, transform_indices = @transform_6, window_bounds = array<i64: 1, 512>}, {pipeline_mode = #tpu.pipeline_mode<synchronous>, transform_indices = @transform_7, window_bounds = array<i64: 1, 512>}, {pipeline_mode = #tpu.pipeline_mode<synchronous>, transform_indices = @transform_8, window_bounds = array<i64: 1, 512>}, {}, {pipeline_mode = #tpu.pipeline_mode<synchronous>, transform_indices = @transform_10, window_bounds = array<i64: 1, 256>}, {pipeline_mode = #tpu.pipeline_mode<synchronous>, transform_indices = @transform_11, window_bounds = array<i64: 1, 256>}, {pipeline_mode = #tpu.pipeline_mode<synchronous>, transform_indices = @transform_12, window_bounds = array<i64: 1, 256>}, {}, {pipeline_mode = #tpu.pipeline_mode<synchronous>, transform_indices = @transform_14, window_bounds = array<i64: 1, 128>}, {pipeline_mode = #tpu.pipeline_mode<synchronous>, transform_indices = @transform_15, window_bounds = array<i64: 8, 128>}]} {
    %c0_i32 = arith.constant 0 : i32
    %0 = tpu.memref_slice %arg20[%c0_i32] : memref<3x!tpu.dma_semaphore, #tpu.memory_space<semaphore_mem>> -> memref<1x!tpu.dma_semaphore, #tpu.memory_space<semaphore_mem>>
    %1 = tpu.memref_squeeze %0 : memref<1x!tpu.dma_semaphore, #tpu.memory_space<semaphore_mem>> -> memref<!tpu.dma_semaphore, #tpu.memory_space<semaphore_mem>>
    tpu.enqueue_dma source(%arg6 : memref<1024x512xbf16, #tpu.memory_space<any>>) target(%arg17 : memref<1024x512xbf16, #tpu.memory_space<vmem>>) target_semaphore(%1 : memref<!tpu.dma_semaphore, #tpu.memory_space<semaphore_mem>>)
    %c1_i32 = arith.constant 1 : i32
    %2 = tpu.memref_slice %arg20[%c1_i32] : memref<3x!tpu.dma_semaphore, #tpu.memory_space<semaphore_mem>> -> memref<1x!tpu.dma_semaphore, #tpu.memory_space<semaphore_mem>>
    %3 = tpu.memref_squeeze %2 : memref<1x!tpu.dma_semaphore, #tpu.memory_space<semaphore_mem>> -> memref<!tpu.dma_semaphore, #tpu.memory_space<semaphore_mem>>
    tpu.enqueue_dma source(%arg10 : memref<512x256xbf16, #tpu.memory_space<any>>) target(%arg18 : memref<512x256xbf16, #tpu.memory_space<vmem>>) target_semaphore(%3 : memref<!tpu.dma_semaphore, #tpu.memory_space<semaphore_mem>>)
    %c2_i32 = arith.constant 2 : i32
    %4 = tpu.memref_slice %arg20[%c2_i32] : memref<3x!tpu.dma_semaphore, #tpu.memory_space<semaphore_mem>> -> memref<1x!tpu.dma_semaphore, #tpu.memory_space<semaphore_mem>>
    %5 = tpu.memref_squeeze %4 : memref<1x!tpu.dma_semaphore, #tpu.memory_space<semaphore_mem>> -> memref<!tpu.dma_semaphore, #tpu.memory_space<semaphore_mem>>
    tpu.enqueue_dma source(%arg14 : memref<256x128xbf16, #tpu.memory_space<any>>) target(%arg19 : memref<256x128xbf16, #tpu.memory_space<vmem>>) target_semaphore(%5 : memref<!tpu.dma_semaphore, #tpu.memory_space<semaphore_mem>>)
    %c0 = arith.constant 0 : index
    %c0_0 = arith.constant 0 : index
    %6 = vector.load %arg1[%c0, %c0_0] : memref<8x128xf32, #tpu.memory_space<vmem>>, vector<8x128xf32>
    %7 = arith.truncf %6 : vector<8x128xf32> to vector<8x128xbf16>
    %c0_1 = arith.constant 0 : index
    %c0_2 = arith.constant 0 : index
    %8 = vector.load %arg2[%c0_1, %c0_2] : memref<128x1024xbf16, #tpu.memory_space<vmem>>, vector<128x1024xbf16>
    %cst = arith.constant dense<0.000000e+00> : vector<8x1024xf32>
    %9 = tpu.matmul %7, %8, %cst {dimension_numbers = #tpu.dot_dimension_numbers<[1], [0], [0], [1], [0, 0, 1, 1], [], []>} : vector<8x128xbf16>, vector<128x1024xbf16>, vector<8x1024xf32> -> vector<8x1024xf32>
    %c0_3 = arith.constant 0 : index
    %c0_4 = arith.constant 0 : index
    %10 = vector.load %arg3[%c0_3, %c0_4] : memref<1x1024xf32, #tpu.memory_space<vmem>>, vector<1x1024xf32>
    %11 = vector.broadcast %10 : vector<1x1024xf32> to vector<8x1024xf32>
    %12 = arith.addf %9, %11 : vector<8x1024xf32>
    %c0_5 = arith.constant 0 : index
    %c0_6 = arith.constant 0 : index
    %13 = vector.load %arg4[%c0_5, %c0_6] : memref<1x1024xf32, #tpu.memory_space<vmem>>, vector<1x1024xf32>
    %c0_7 = arith.constant 0 : index
    %c0_8 = arith.constant 0 : index
    %14 = vector.load %arg5[%c0_7, %c0_8] : memref<1x1024xf32, #tpu.memory_space<vmem>>, vector<1x1024xf32>
    %cst_9 = arith.constant dense<0.000000e+00> : vector<1024xf32>
    %15 = vector.multi_reduction <add>, %12, %cst_9 [0] : vector<8x1024xf32> to vector<1024xf32>
    %16 = vector.shape_cast %15 : vector<1024xf32> to vector<1x1024xf32>
    %cst_10 = arith.constant 8.000000e+00 : f32
    %17 = vector.broadcast %cst_10 : f32 to vector<1x1024xf32>
    %18 = arith.divf %16, %17 : vector<1x1024xf32>
    %19 = vector.broadcast %18 : vector<1x1024xf32> to vector<8x1024xf32>
    %20 = arith.subf %12, %19 : vector<8x1024xf32>
    %21 = arith.mulf %20, %20 : vector<8x1024xf32>
    %cst_11 = arith.constant dense<0.000000e+00> : vector<1024xf32>
    %22 = vector.multi_reduction <add>, %21, %cst_11 [0] : vector<8x1024xf32> to vector<1024xf32>
    %23 = vector.shape_cast %22 : vector<1024xf32> to vector<1x1024xf32>
    %cst_12 = arith.constant 8.000000e+00 : f32
    %24 = vector.broadcast %cst_12 : f32 to vector<1x1024xf32>
    %25 = arith.divf %23, %24 : vector<1x1024xf32>
    %cst_13 = arith.constant 9.99999974E-6 : f32
    %26 = vector.broadcast %cst_13 : f32 to vector<1x1024xf32>
    %27 = arith.addf %25, %26 : vector<1x1024xf32>
    %28 = math.rsqrt %27 : vector<1x1024xf32>
    %29 = arith.mulf %13, %28 : vector<1x1024xf32>
    %30 = arith.mulf %18, %29 : vector<1x1024xf32>
    %31 = arith.subf %14, %30 : vector<1x1024xf32>
    %32 = vector.broadcast %29 : vector<1x1024xf32> to vector<8x1024xf32>
    %33 = arith.mulf %12, %32 : vector<8x1024xf32>
    %34 = vector.broadcast %31 : vector<1x1024xf32> to vector<8x1024xf32>
    %35 = arith.addf %33, %34 : vector<8x1024xf32>
    %cst_14 = arith.constant 0.000000e+00 : f32
    %36 = vector.broadcast %cst_14 : f32 to vector<8x1024xf32>
    %37 = arith.maximumf %35, %36 : vector<8x1024xf32>
    %c0_i32_15 = arith.constant 0 : i32
    %38 = tpu.memref_slice %arg20[%c0_i32_15] : memref<3x!tpu.dma_semaphore, #tpu.memory_space<semaphore_mem>> -> memref<1x!tpu.dma_semaphore, #tpu.memory_space<semaphore_mem>>
    %39 = tpu.memref_squeeze %38 : memref<1x!tpu.dma_semaphore, #tpu.memory_space<semaphore_mem>> -> memref<!tpu.dma_semaphore, #tpu.memory_space<semaphore_mem>>
    tpu.wait_dma2 semaphore(%39 : memref<!tpu.dma_semaphore, #tpu.memory_space<semaphore_mem>>) src(%arg6 : memref<1024x512xbf16, #tpu.memory_space<any>>) dst(%arg17 : memref<1024x512xbf16, #tpu.memory_space<vmem>>)
    %40 = arith.truncf %37 : vector<8x1024xf32> to vector<8x1024xbf16>
    %c0_16 = arith.constant 0 : index
    %c0_17 = arith.constant 0 : index
    %41 = vector.load %arg17[%c0_16, %c0_17] : memref<1024x512xbf16, #tpu.memory_space<vmem>>, vector<1024x512xbf16>
    %cst_18 = arith.constant dense<0.000000e+00> : vector<8x512xf32>
    %42 = tpu.matmul %40, %41, %cst_18 {dimension_numbers = #tpu.dot_dimension_numbers<[1], [0], [0], [1], [0, 0, 1, 1], [], []>} : vector<8x1024xbf16>, vector<1024x512xbf16>, vector<8x512xf32> -> vector<8x512xf32>
    %c0_19 = arith.constant 0 : index
    %c0_20 = arith.constant 0 : index
    %43 = vector.load %arg7[%c0_19, %c0_20] : memref<1x512xf32, #tpu.memory_space<vmem>>, vector<1x512xf32>
    %44 = vector.broadcast %43 : vector<1x512xf32> to vector<8x512xf32>
    %45 = arith.addf %42, %44 : vector<8x512xf32>
    %c0_21 = arith.constant 0 : index
    %c0_22 = arith.constant 0 : index
    %46 = vector.load %arg8[%c0_21, %c0_22] : memref<1x512xf32, #tpu.memory_space<vmem>>, vector<1x512xf32>
    %c0_23 = arith.constant 0 : index
    %c0_24 = arith.constant 0 : index
    %47 = vector.load %arg9[%c0_23, %c0_24] : memref<1x512xf32, #tpu.memory_space<vmem>>, vector<1x512xf32>
    %cst_25 = arith.constant dense<0.000000e+00> : vector<512xf32>
    %48 = vector.multi_reduction <add>, %45, %cst_25 [0] : vector<8x512xf32> to vector<512xf32>
    %49 = vector.shape_cast %48 : vector<512xf32> to vector<1x512xf32>
    %cst_26 = arith.constant 8.000000e+00 : f32
    %50 = vector.broadcast %cst_26 : f32 to vector<1x512xf32>
    %51 = arith.divf %49, %50 : vector<1x512xf32>
    %52 = vector.broadcast %51 : vector<1x512xf32> to vector<8x512xf32>
    %53 = arith.subf %45, %52 : vector<8x512xf32>
    %54 = arith.mulf %53, %53 : vector<8x512xf32>
    %cst_27 = arith.constant dense<0.000000e+00> : vector<512xf32>
    %55 = vector.multi_reduction <add>, %54, %cst_27 [0] : vector<8x512xf32> to vector<512xf32>
    %56 = vector.shape_cast %55 : vector<512xf32> to vector<1x512xf32>
    %cst_28 = arith.constant 8.000000e+00 : f32
    %57 = vector.broadcast %cst_28 : f32 to vector<1x512xf32>
    %58 = arith.divf %56, %57 : vector<1x512xf32>
    %cst_29 = arith.constant 9.99999974E-6 : f32
    %59 = vector.broadcast %cst_29 : f32 to vector<1x512xf32>
    %60 = arith.addf %58, %59 : vector<1x512xf32>
    %61 = math.rsqrt %60 : vector<1x512xf32>
    %62 = arith.mulf %46, %61 : vector<1x512xf32>
    %63 = arith.mulf %51, %62 : vector<1x512xf32>
    %64 = arith.subf %47, %63 : vector<1x512xf32>
    %65 = vector.broadcast %62 : vector<1x512xf32> to vector<8x512xf32>
    %66 = arith.mulf %45, %65 : vector<8x512xf32>
    %67 = vector.broadcast %64 : vector<1x512xf32> to vector<8x512xf32>
    %68 = arith.addf %66, %67 : vector<8x512xf32>
    %cst_30 = arith.constant 0.000000e+00 : f32
    %69 = vector.broadcast %cst_30 : f32 to vector<8x512xf32>
    %70 = arith.maximumf %68, %69 : vector<8x512xf32>
    %c1_i32_31 = arith.constant 1 : i32
    %71 = tpu.memref_slice %arg20[%c1_i32_31] : memref<3x!tpu.dma_semaphore, #tpu.memory_space<semaphore_mem>> -> memref<1x!tpu.dma_semaphore, #tpu.memory_space<semaphore_mem>>
    %72 = tpu.memref_squeeze %71 : memref<1x!tpu.dma_semaphore, #tpu.memory_space<semaphore_mem>> -> memref<!tpu.dma_semaphore, #tpu.memory_space<semaphore_mem>>
    tpu.wait_dma2 semaphore(%72 : memref<!tpu.dma_semaphore, #tpu.memory_space<semaphore_mem>>) src(%arg10 : memref<512x256xbf16, #tpu.memory_space<any>>) dst(%arg18 : memref<512x256xbf16, #tpu.memory_space<vmem>>)
    %73 = arith.truncf %70 : vector<8x512xf32> to vector<8x512xbf16>
    %c0_32 = arith.constant 0 : index
    %c0_33 = arith.constant 0 : index
    %74 = vector.load %arg18[%c0_32, %c0_33] : memref<512x256xbf16, #tpu.memory_space<vmem>>, vector<512x256xbf16>
    %cst_34 = arith.constant dense<0.000000e+00> : vector<8x256xf32>
    %75 = tpu.matmul %73, %74, %cst_34 {dimension_numbers = #tpu.dot_dimension_numbers<[1], [0], [0], [1], [0, 0, 1, 1], [], []>} : vector<8x512xbf16>, vector<512x256xbf16>, vector<8x256xf32> -> vector<8x256xf32>
    %c0_35 = arith.constant 0 : index
    %c0_36 = arith.constant 0 : index
    %76 = vector.load %arg11[%c0_35, %c0_36] : memref<1x256xf32, #tpu.memory_space<vmem>>, vector<1x256xf32>
    %77 = vector.broadcast %76 : vector<1x256xf32> to vector<8x256xf32>
    %78 = arith.addf %75, %77 : vector<8x256xf32>
    %c0_37 = arith.constant 0 : index
    %c0_38 = arith.constant 0 : index
    %79 = vector.load %arg12[%c0_37, %c0_38] : memref<1x256xf32, #tpu.memory_space<vmem>>, vector<1x256xf32>
    %c0_39 = arith.constant 0 : index
    %c0_40 = arith.constant 0 : index
    %80 = vector.load %arg13[%c0_39, %c0_40] : memref<1x256xf32, #tpu.memory_space<vmem>>, vector<1x256xf32>
    %cst_41 = arith.constant dense<0.000000e+00> : vector<256xf32>
    %81 = vector.multi_reduction <add>, %78, %cst_41 [0] : vector<8x256xf32> to vector<256xf32>
    %82 = vector.shape_cast %81 : vector<256xf32> to vector<1x256xf32>
    %cst_42 = arith.constant 8.000000e+00 : f32
    %83 = vector.broadcast %cst_42 : f32 to vector<1x256xf32>
    %84 = arith.divf %82, %83 : vector<1x256xf32>
    %85 = vector.broadcast %84 : vector<1x256xf32> to vector<8x256xf32>
    %86 = arith.subf %78, %85 : vector<8x256xf32>
    %87 = arith.mulf %86, %86 : vector<8x256xf32>
    %cst_43 = arith.constant dense<0.000000e+00> : vector<256xf32>
    %88 = vector.multi_reduction <add>, %87, %cst_43 [0] : vector<8x256xf32> to vector<256xf32>
    %89 = vector.shape_cast %88 : vector<256xf32> to vector<1x256xf32>
    %cst_44 = arith.constant 8.000000e+00 : f32
    %90 = vector.broadcast %cst_44 : f32 to vector<1x256xf32>
    %91 = arith.divf %89, %90 : vector<1x256xf32>
    %cst_45 = arith.constant 9.99999974E-6 : f32
    %92 = vector.broadcast %cst_45 : f32 to vector<1x256xf32>
    %93 = arith.addf %91, %92 : vector<1x256xf32>
    %94 = math.rsqrt %93 : vector<1x256xf32>
    %95 = arith.mulf %79, %94 : vector<1x256xf32>
    %96 = arith.mulf %84, %95 : vector<1x256xf32>
    %97 = arith.subf %80, %96 : vector<1x256xf32>
    %98 = vector.broadcast %95 : vector<1x256xf32> to vector<8x256xf32>
    %99 = arith.mulf %78, %98 : vector<8x256xf32>
    %100 = vector.broadcast %97 : vector<1x256xf32> to vector<8x256xf32>
    %101 = arith.addf %99, %100 : vector<8x256xf32>
    %cst_46 = arith.constant 0.000000e+00 : f32
    %102 = vector.broadcast %cst_46 : f32 to vector<8x256xf32>
    %103 = arith.maximumf %101, %102 : vector<8x256xf32>
    %c2_i32_47 = arith.constant 2 : i32
    %104 = tpu.memref_slice %arg20[%c2_i32_47] : memref<3x!tpu.dma_semaphore, #tpu.memory_space<semaphore_mem>> -> memref<1x!tpu.dma_semaphore, #tpu.memory_space<semaphore_mem>>
    %105 = tpu.memref_squeeze %104 : memref<1x!tpu.dma_semaphore, #tpu.memory_space<semaphore_mem>> -> memref<!tpu.dma_semaphore, #tpu.memory_space<semaphore_mem>>
    tpu.wait_dma2 semaphore(%105 : memref<!tpu.dma_semaphore, #tpu.memory_space<semaphore_mem>>) src(%arg14 : memref<256x128xbf16, #tpu.memory_space<any>>) dst(%arg19 : memref<256x128xbf16, #tpu.memory_space<vmem>>)
    %106 = arith.truncf %103 : vector<8x256xf32> to vector<8x256xbf16>
    %c0_48 = arith.constant 0 : index
    %c0_49 = arith.constant 0 : index
    %107 = vector.load %arg19[%c0_48, %c0_49] : memref<256x128xbf16, #tpu.memory_space<vmem>>, vector<256x128xbf16>
    %cst_50 = arith.constant dense<0.000000e+00> : vector<8x128xf32>
    %108 = tpu.matmul %106, %107, %cst_50 {dimension_numbers = #tpu.dot_dimension_numbers<[1], [0], [0], [1], [0, 0, 1, 1], [], []>} : vector<8x256xbf16>, vector<256x128xbf16>, vector<8x128xf32> -> vector<8x128xf32>
    %c0_51 = arith.constant 0 : index
    %c0_52 = arith.constant 0 : index
    %109 = vector.load %arg15[%c0_51, %c0_52] : memref<1x128xf32, #tpu.memory_space<vmem>>, vector<1x128xf32>
    %110 = vector.broadcast %109 : vector<1x128xf32> to vector<8x128xf32>
    %111 = arith.addf %108, %110 : vector<8x128xf32>
    %112 = math.tanh %111 : vector<8x128xf32>
    %c0_53 = arith.constant 0 : index
    %c0_54 = arith.constant 0 : index
    %113 = vector.load %arg16[%c0_53, %c0_54] : memref<8x128xf32, #tpu.memory_space<vmem>>, vector<8x128xf32>
    tpu.vector_store %arg16[%c0_53, %c0_54], %112 {strides = array<i32>} : memref<8x128xf32, #tpu.memory_space<vmem>>, vector<8x128xf32>,
    return
  }
  func.func @transform_0(%arg0: i32) -> (i32, i32) {
    %c0_i32 = arith.constant 0 : i32
    %c0_i32_0 = arith.constant 0 : i32
    %c0_i32_1 = arith.constant 0 : i32
    return %c0_i32, %c0_i32_0 : i32, i32
  }
  func.func @transform_1(%arg0: i32) -> (i32, i32) {
    %c0_i32 = arith.constant 0 : i32
    %c0_i32_0 = arith.constant 0 : i32
    %c0_i32_1 = arith.constant 0 : i32
    return %c0_i32, %c0_i32_0 : i32, i32
  }
  func.func @transform_2(%arg0: i32) -> (i32, i32) {
    %c0_i32 = arith.constant 0 : i32
    %c0_i32_0 = arith.constant 0 : i32
    %c0_i32_1 = arith.constant 0 : i32
    return %c0_i32, %c0_i32_0 : i32, i32
  }
  func.func @transform_3(%arg0: i32) -> (i32, i32) {
    %c0_i32 = arith.constant 0 : i32
    %c0_i32_0 = arith.constant 0 : i32
    %c0_i32_1 = arith.constant 0 : i32
    return %c0_i32, %c0_i32_0 : i32, i32
  }
  func.func @transform_4(%arg0: i32) -> (i32, i32) {
    %c0_i32 = arith.constant 0 : i32
    %c0_i32_0 = arith.constant 0 : i32
    %c0_i32_1 = arith.constant 0 : i32
    return %c0_i32, %c0_i32_0 : i32, i32
  }
  func.func @transform_6(%arg0: i32) -> (i32, i32) {
    %c0_i32 = arith.constant 0 : i32
    %c0_i32_0 = arith.constant 0 : i32
    %c0_i32_1 = arith.constant 0 : i32
    return %c0_i32, %c0_i32_0 : i32, i32
  }
  func.func @transform_7(%arg0: i32) -> (i32, i32) {
    %c0_i32 = arith.constant 0 : i32
    %c0_i32_0 = arith.constant 0 : i32
    %c0_i32_1 = arith.constant 0 : i32
    return %c0_i32, %c0_i32_0 : i32, i32
  }
  func.func @transform_8(%arg0: i32) -> (i32, i32) {
    %c0_i32 = arith.constant 0 : i32
    %c0_i32_0 = arith.constant 0 : i32
    %c0_i32_1 = arith.constant 0 : i32
    return %c0_i32, %c0_i32_0 : i32, i32
  }
  func.func @transform_10(%arg0: i32) -> (i32, i32) {
    %c0_i32 = arith.constant 0 : i32
    %c0_i32_0 = arith.constant 0 : i32
    %c0_i32_1 = arith.constant 0 : i32
    return %c0_i32, %c0_i32_0 : i32, i32
  }
  func.func @transform_11(%arg0: i32) -> (i32, i32) {
    %c0_i32 = arith.constant 0 : i32
    %c0_i32_0 = arith.constant 0 : i32
    %c0_i32_1 = arith.constant 0 : i32
    return %c0_i32, %c0_i32_0 : i32, i32
  }
  func.func @transform_12(%arg0: i32) -> (i32, i32) {
    %c0_i32 = arith.constant 0 : i32
    %c0_i32_0 = arith.constant 0 : i32
    %c0_i32_1 = arith.constant 0 : i32
    return %c0_i32, %c0_i32_0 : i32, i32
  }
  func.func @transform_14(%arg0: i32) -> (i32, i32) {
    %c0_i32 = arith.constant 0 : i32
    %c0_i32_0 = arith.constant 0 : i32
    %c0_i32_1 = arith.constant 0 : i32
    return %c0_i32, %c0_i32_0 : i32, i32
  }
  func.func @transform_15(%arg0: i32) -> (i32, i32) {
    %c0_i32 = arith.constant 0 : i32
    %c0_i32_0 = arith.constant 0 : i32
    %c0_i32_1 = arith.constant 0 : i32
    return %c0_i32, %c0_i32_0 : i32, i32
  }
}

</mosaic_0001>

<llo_original>
// kernel: tpu_custom_call.1
$region0: #{tpu_custom_call.1}
  #allocation0 [shape = 'u32[]', space=smem, size = 0x4, offset = 0x4, fixed_abs, tag = 'smem constant byte address 0x4 - core index']
  #allocation1 [shape = 'u32[144,128]{1,0:T(1,128)}', space=vmem, size = 0x12000, scoped, tag = 'internal scratch']
  #allocation2 [shape = 'bf16[1024,512]{1,0:T(16,128)(2,1)}', space=vmem, size = 0x100000, scoped, tag = 'scratch operand']
  #allocation3 [shape = 'bf16[512,256]{1,0:T(16,128)(2,1)}', space=vmem, size = 0x40000, scoped, tag = 'scratch operand']
  #allocation4 [shape = 'bf16[256,128]{1,0:T(16,128)(2,1)}', space=vmem, size = 0x10000, scoped, tag = 'scratch operand']
  #allocation5 [shape = 's32[3]{0}', space=sflag, size = 0xc, scoped, tag = 'scratch operand']
  #allocation15 [shape = 's32[]', space=sflag, size = 0x4, offset = 0, fixed_abs, tag = 'sflag constant byte address 0x0 - dummy sync flag']
  #allocation17 [shape = 's32[]', space=sflag, size = 0x4, offset = 0, fixed_abs, tag = 'sflag constant byte address 0x0 - dummy sync flag']
  #allocation19 [shape = 's32[]', space=sflag, size = 0x4, offset = 0, fixed_abs, tag = 'sflag constant byte address 0x0 - dummy sync flag']
  #allocation20 [shape = 's32[]', space=sflag, size = 0x4, offset = 0, fixed_abs, tag = 'sflag constant byte address 0x0 - dummy sync flag']
  #allocation21 [shape = 'u32[]', space=smem, size = 0x4, offset = 0x44, fixed_abs, tag = 'smem constant byte address 0x44 - assertion arg 0']
  #allocation22 [shape = 'u32[]', space=smem, size = 0x4, offset = 0x48, fixed_abs, tag = 'smem constant byte address 0x48 - assertion arg 1']
  %s0 = inlined_call_operand.hbm [shape: f32[8,128], index: 0, kind: input, shape index: {}]
  %s1 = inlined_call_operand.hbm [shape: bf16[128,1024], index: 1, kind: input, shape index: {}]
  %s2 = inlined_call_operand.hbm [shape: f32[1,1024], index: 2, kind: input, shape index: {}]
  %s3 = inlined_call_operand.vmem [shape: f32[1,1024], index: 3, kind: input, shape index: {}]
  %s4 = inlined_call_operand.hbm [shape: f32[1,1024], index: 4, kind: input, shape index: {}]
  %s5 = inlined_call_operand.hbm [shape: bf16[1024,512], index: 5, kind: input, shape index: {}]
  %s6 = inlined_call_operand.vmem [shape: f32[1,512], index: 6, kind: input, shape index: {}]
  %s7 = inlined_call_operand.vmem [shape: f32[1,512], index: 7, kind: input, shape index: {}]
  %s8 = inlined_call_operand.vmem [shape: f32[1,512], index: 8, kind: input, shape index: {}]
  %s9 = inlined_call_operand.hbm [shape: bf16[512,256], index: 9, kind: input, shape index: {}]
  %s10 = inlined_call_operand.vmem [shape: f32[1,256], index: 10, kind: input, shape index: {}]
  %s11 = inlined_call_operand.vmem [shape: f32[1,256], index: 11, kind: input, shape index: {}]
  %s12 = inlined_call_operand.vmem [shape: f32[1,256], index: 12, kind: input, shape index: {}]
  %s13 = inlined_call_operand.hbm [shape: bf16[256,128], index: 13, kind: input, shape index: {}]
  %s14 = inlined_call_operand.vmem [shape: f32[1,128], index: 14, kind: input, shape index: {}]
  %s15 = inlined_call_operand.hbm [shape: f32[8,128], index: 15, kind: output, shape index: {}]
  %s16 = sld [smem:[#allocation0]]
  $region78: #{tpu_custom_call.1} parent=0
    _
  %s18 = ssub.s32 1, %s16
  %s19 = scalar_select 0, %s18, %s16
  $region1: #{tpu_custom_call.1} parent=0
    #allocation6 [shape = 'u8[4096]{0}', space=vmem, size = 0x1000, scoped, tag = 'input window, operand 0, single buffered']
    #allocation7 [shape = 's32[1]{0}', space=sflag, size = 0x4, scoped, tag = 'scoped memory for tpu_custom_call.1']
    #allocation8 [shape = 's32[1]{0}', space=sflag, size = 0x4, scoped, tag = 'scoped memory for tpu_custom_call.1']
    #allocation9 [shape = 'u8[262144]{0}', space=vmem, size = 0x40000, scoped, tag = 'input window, operand 1, single buffered']
    #allocation10 [shape = 's32[1]{0}', space=sflag, size = 0x4, scoped, tag = 'scoped memory for tpu_custom_call.1']
    #allocation11 [shape = 'u8[4096]{0}', space=vmem, size = 0x1000, scoped, tag = 'input window, operand 2, single buffered']
    #allocation12 [shape = 'u8[4096]{0}', space=vmem, size = 0x1000, scoped, tag = 'input window, operand 4, single buffered']
    #allocation13 [shape = 's32[1]{0}', space=sflag, size = 0x4, scoped, tag = 'scoped memory for tpu_custom_call.1']
    #allocation14 [shape = 'u8[4096]{0}', space=vmem, size = 0x1000, scoped, tag = 'output window, operand 0, single buffered']
    #allocation16 [shape = 'u32[9]{0}', space=smem, size = 0x24, scoped, tag = 'DMA stride descriptor']
    #allocation18 [shape = 'u32[9]{0}', space=smem, size = 0x24, scoped, tag = 'DMA stride descriptor']
    %20 = vsyncpa [#allocation7], 0
    %21 = vsyncpa [#allocation10], 0
    %22 = vsyncpa [#allocation13], 0
    %23 = vsyncpa [#allocation8], 0
    // Predicated region
    $region2: #{tpu_custom_call.1} parent=1 // pred_check
      _
    $region3: #{tpu_custom_call.1} parent=1 // pred_check_branch
      %25 = sbr.rel (0) target = $region5
    $region4: #{tpu_custom_call.1} parent=1 // pred_region
      %s27 = ssub.s32 128, 128
      %28 = vsyncadd [#allocation7], %s27
      %s30 = sshll.u32 [#allocation6], 4
      %s31 = int_to_ptr.vmem [resolvable:$true] %s30
      %33 = dma.hbm_to_vmem [thread:$0]  %s0, 128, %s31, [#allocation7]
    $region5: #{tpu_custom_call.1} parent=1 // pred_fallthru
      _
    // Predicated region
    $region6: #{tpu_custom_call.1} parent=1 // pred_check
      _
    $region7: #{tpu_custom_call.1} parent=1 // pred_check_branch
      %35 = sbr.rel (0) target = $region9
    $region8: #{tpu_custom_call.1} parent=1 // pred_region
      %s37 = ssub.s32 8192, 8192
      %38 = vsyncadd [#allocation10], %s37
      %s39 = sshll.u32 [#allocation9], 4
      %s40 = int_to_ptr.vmem [resolvable:$true] %s39
      %45 = dma.hbm_to_vmem [thread:$0]  %s1, 8192, %s40, [#allocation10], 512, 512, 32
    $region9: #{tpu_custom_call.1} parent=1 // pred_fallthru
      _
    // Predicated region
    $region10: #{tpu_custom_call.1} parent=1 // pred_check
      _
    $region11: #{tpu_custom_call.1} parent=1 // pred_check_branch
      %47 = sbr.rel (0) target = $region13
    $region12: #{tpu_custom_call.1} parent=1 // pred_region
      %s49 = ssub.s32 128, 128
      %50 = vsyncadd [#allocation10], %s49
      %s52 = sshll.u32 [#allocation11], 4
      %s53 = int_to_ptr.vmem [resolvable:$true] %s52
      %55 = dma.hbm_to_vmem [thread:$0]  %s2, 128, %s53, [#allocation10]
    $region13: #{tpu_custom_call.1} parent=1 // pred_fallthru
      _
    // Predicated region
    $region14: #{tpu_custom_call.1} parent=1 // pred_check
      _
    $region15: #{tpu_custom_call.1} parent=1 // pred_check_branch
      %57 = sbr.rel (0) target = $region17
    $region16: #{tpu_custom_call.1} parent=1 // pred_region
      _
    $region17: #{tpu_custom_call.1} parent=1 // pred_fallthru
      _
    // Predicated region
    $region18: #{tpu_custom_call.1} parent=1 // pred_check
      _
    $region19: #{tpu_custom_call.1} parent=1 // pred_check_branch
      %59 = sbr.rel (0) target = $region21
    $region20: #{tpu_custom_call.1} parent=1 // pred_region
      %s61 = ssub.s32 128, 128
      %62 = vsyncadd [#allocation13], %s61
      %s64 = sshll.u32 [#allocation12], 4
      %s65 = int_to_ptr.vmem [resolvable:$true] %s64
      %67 = dma.hbm_to_vmem [thread:$0]  %s4, 128, %s65, [#allocation13]
    $region21: #{tpu_custom_call.1} parent=1 // pred_fallthru
      _
    // Predicated region
    $region22: #{tpu_custom_call.1} parent=1 // pred_check
      _
    $region23: #{tpu_custom_call.1} parent=1 // pred_check_branch
      %69 = sbr.rel (0) target = $region25
    $region24: #{tpu_custom_call.1} parent=1 // pred_region
      _
    $region25: #{tpu_custom_call.1} parent=1 // pred_fallthru
      _
    // Predicated region
    $region26: #{tpu_custom_call.1} parent=1 // pred_check
      _
    $region27: #{tpu_custom_call.1} parent=1 // pred_check_branch
      %71 = sbr.rel (0) target = $region29
    $region28: #{tpu_custom_call.1} parent=1 // pred_region
      _
    $region29: #{tpu_custom_call.1} parent=1 // pred_fallthru
      _
    // Predicated region
    $region30: #{tpu_custom_call.1} parent=1 // pred_check
      _
    $region31: #{tpu_custom_call.1} parent=1 // pred_check_branch
      %73 = sbr.rel (0) target = $region33
    $region32: #{tpu_custom_call.1} parent=1 // pred_region
      _
    $region33: #{tpu_custom_call.1} parent=1 // pred_fallthru
      _
    // Predicated region
    $region34: #{tpu_custom_call.1} parent=1 // pred_check
      _
    $region35: #{tpu_custom_call.1} parent=1 // pred_check_branch
      %75 = sbr.rel (0) target = $region37
    $region36: #{tpu_custom_call.1} parent=1 // pred_region
      _
    $region37: #{tpu_custom_call.1} parent=1 // pred_fallthru
      _
    // Predicated region
    $region38: #{tpu_custom_call.1} parent=1 // pred_check
      _
    $region39: #{tpu_custom_call.1} parent=1 // pred_check_branch
      %77 = sbr.rel (0) target = $region41
    $region40: #{tpu_custom_call.1} parent=1 // pred_region
      _
    $region41: #{tpu_custom_call.1} parent=1 // pred_fallthru
      _
    // Predicated region
    $region42: #{tpu_custom_call.1} parent=1 // pred_check
      _
    $region43: #{tpu_custom_call.1} parent=1 // pred_check_branch
      %79 = sbr.rel (0) target = $region45
    $region44: #{tpu_custom_call.1} parent=1 // pred_region
      _
    $region45: #{tpu_custom_call.1} parent=1 // pred_fallthru
      _
    // Predicated region
    $region46: #{tpu_custom_call.1} parent=1 // pred_check
      _
    $region47: #{tpu_custom_call.1} parent=1 // pred_check_branch
      %81 = sbr.rel (0) target = $region49
    $region48: #{tpu_custom_call.1} parent=1 // pred_region
      _
    $region49: #{tpu_custom_call.1} parent=1 // pred_fallthru
      _
    // Predicated region
    $region50: #{tpu_custom_call.1} parent=1 // pred_check
      _
    $region51: #{tpu_custom_call.1} parent=1 // pred_check_branch
      %83 = sbr.rel (0) target = $region53
    $region52: #{tpu_custom_call.1} parent=1 // pred_region
      %84 = dma.done [#allocation7], 128
    $region53: #{tpu_custom_call.1} parent=1 // pred_fallthru
      _
    // Predicated region
    $region54: #{tpu_custom_call.1} parent=1 // pred_check
      _
    $region55: #{tpu_custom_call.1} parent=1 // pred_check_branch
      %86 = sbr.rel (0) target = $region57
    $region56: #{tpu_custom_call.1} parent=1 // pred_region
      %87 = dma.done [#allocation10], 8192
    $region57: #{tpu_custom_call.1} parent=1 // pred_fallthru
      _
    // Predicated region
    $region58: #{tpu_custom_call.1} parent=1 // pred_check
      _
    $region59: #{tpu_custom_call.1} parent=1 // pred_check_branch
      %89 = sbr.rel (0) target = $region61
    $region60: #{tpu_custom_call.1} parent=1 // pred_region
      %90 = dma.done [#allocation10], 128
    $region61: #{tpu_custom_call.1} parent=1 // pred_fallthru
      _
    // Predicated region
    $region62: #{tpu_custom_call.1} parent=1 // pred_check
      _
    $region63: #{tpu_custom_call.1} parent=1 // pred_check_branch
      %92 = sbr.rel (0) target = $region65
    $region64: #{tpu_custom_call.1} parent=1 // pred_region
      %93 = dma.done [#allocation13], 128
    $region65: #{tpu_custom_call.1} parent=1 // pred_fallthru
      _
    %s96 = sshll.u32 1, 14
    %s97 = sxor.u32 4294967295, %s96
    %s99 = sld [smem:[#allocation0]]
    %s100 = sadd.s32 2, %s99
    %s102 = sshll.u32 7, 26
    %s103 = sxor.u32 4294967295, %s102
    %s104 = sand.u32 0, %s103
    %s105 = sshll.u32 %s100, 26
    %s106 = sor.u32 %s104, %s105
    %s107 = sshll.u32 [#allocation2], 4
    %s108 = int_to_ptr.vmem [resolvable:$true] %s107
    %111 = sst [smem:[#allocation16]] 512
    %s112 = scalar_lea.smem [#allocation16], 1
    %113 = sst [smem:[%s112]] 512
    %s114 = scalar_lea.smem [#allocation16], 2
    %115 = sst [smem:[%s114]] 4
    %s116 = scalar_lea.smem [#allocation16], 3
    %117 = sst [smem:[%s116]] 64
    %s118 = scalar_lea.smem [#allocation16], 4
    %119 = sst [smem:[%s118]] 128
    %s120 = scalar_lea.smem [#allocation16], 5
    %121 = sst [smem:[%s120]] 2
    %s122 = scalar_lea.smem [#allocation16], 6
    %123 = sst [smem:[%s122]] 256
    %s124 = scalar_lea.smem [#allocation16], 7
    %125 = sst [smem:[%s124]] 64
    %s126 = scalar_lea.smem [#allocation16], 8
    %127 = sst [smem:[%s126]] 4
    %129 = dma.general %s5, 32768, %s108, [#allocation5], [#allocation15], [#allocation16], %s106, 0
    %s130 = scalar_lea.sflag [#allocation5], 1
    %s132 = sshll.u32 1, 14
    %s133 = sxor.u32 4294967295, %s132
    %s135 = sadd.s32 2, %s99
    %s137 = sshll.u32 7, 26
    %s138 = sxor.u32 4294967295, %s137
    %s139 = sand.u32 0, %s138
    %s140 = sshll.u32 %s135, 26
    %s141 = sor.u32 %s139, %s140
    %s142 = sshll.u32 [#allocation3], 4
    %s143 = int_to_ptr.vmem [resolvable:$true] %s142
    %146 = sst [smem:[#allocation18]] 256
    %s147 = scalar_lea.smem [#allocation18], 1
    %148 = sst [smem:[%s147]] 256
    %s149 = scalar_lea.smem [#allocation18], 2
    %150 = sst [smem:[%s149]] 2
    %s151 = scalar_lea.smem [#allocation18], 3
    %152 = sst [smem:[%s151]] 64
    %s153 = scalar_lea.smem [#allocation18], 4
    %154 = sst [smem:[%s153]] 128
    %s155 = scalar_lea.smem [#allocation18], 5
    %156 = sst [smem:[%s155]] 2
    %s157 = scalar_lea.smem [#allocation18], 6
    %158 = sst [smem:[%s157]] 128
    %s159 = scalar_lea.smem [#allocation18], 7
    %160 = sst [smem:[%s159]] 64
    %s161 = scalar_lea.smem [#allocation18], 8
    %162 = sst [smem:[%s161]] 4
    %164 = dma.general %s9, 8192, %s143, %s130, [#allocation17], [#allocation18], %s141, 0
    %s165 = scalar_lea.sflag [#allocation5], 2
    // Predicated region
    $region66: #{tpu_custom_call.1} parent=1 // pred_check
      _
    $region67: #{tpu_custom_call.1} parent=1 // pred_check_branch
      %167 = sbr.rel target = $region69
    $region68: #{tpu_custom_call.1} parent=1 // pred_region
      %168 = sst [smem:[#allocation21]] [#allocation20]
      %169 = sst [smem:[#allocation22]] [#allocation19]
    $region69: #{tpu_custom_call.1} parent=1 // pred_fallthru
      _
    %171 = shalt.err (0)
    %s173 = sshll.u32 [#allocation4], 4
    %s174 = int_to_ptr.vmem [resolvable:$true] %s173
    %176 = dma.hbm_to_vmem [thread:$0]  %s13, 2048, %s174, %s165
    %v177 = vld [vmem:[#allocation6] sm:$0xff]
    %v178 = vpack.c.bf16 %v177, %v177
    %v179 = vld [vmem:[#allocation9] sm:$0xff]
    %v180 = vld [vmem:[#allocation9 + $0x8] sm:$0xff]
    %v181 = vld [vmem:[#allocation9 + $0x10] sm:$0xff]
    %v182 = vld [vmem:[#allocation9 + $0x18] sm:$0xff]
    %v183 = vld [vmem:[#allocation9 + $0x20] sm:$0xff]
    %v184 = vld [vmem:[#allocation9 + $0x28] sm:$0xff]
    %v185 = vld [vmem:[#allocation9 + $0x30] sm:$0xff]
    %v186 = vld [vmem:[#allocation9 + $0x38] sm:$0xff]
    %v187 = vld [vmem:[#allocation9 + $0x40] sm:$0xff]
    %v188 = vld [vmem:[#allocation9 + $0x48] sm:$0xff]
    %v189 = vld [vmem:[#allocation9 + $0x50] sm:$0xff]
    %v190 = vld [vmem:[#allocation9 + $0x58] sm:$0xff]
    %v191 = vld [vmem:[#allocation9 + $0x60] sm:$0xff]
    %v192 = vld [vmem:[#allocation9 + $0x68] sm:$0xff]
    %v193 = vld [vmem:[#allocation9 + $0x70] sm:$0xff]
    %v194 = vld [vmem:[#allocation9 + $0x78] sm:$0xff]
    %v195 = vld [vmem:[#allocation9 + $0x80] sm:$0xff]
    %v196 = vld [vmem:[#allocation9 + $0x88] sm:$0xff]
    %v197 = vld [vmem:[#allocation9 + $0x90] sm:$0xff]
    %v198 = vld [vmem:[#allocation9 + $0x98] sm:$0xff]
    %v199 = vld [vmem:[#allocation9 + $0xa0] sm:$0xff]
    %v200 = vld [vmem:[#allocation9 + $0xa8] sm:$0xff]
    %v201 = vld [vmem:[#allocation9 + $0xb0] sm:$0xff]
    %v202 = vld [vmem:[#allocation9 + $0xb8] sm:$0xff]
    %v203 = vld [vmem:[#allocation9 + $0xc0] sm:$0xff]
    %v204 = vld [vmem:[#allocation9 + $0xc8] sm:$0xff]
    %v205 = vld [vmem:[#allocation9 + $0xd0] sm:$0xff]
    %v206 = vld [vmem:[#allocation9 + $0xd8] sm:$0xff]
    %v207 = vld [vmem:[#allocation9 + $0xe0] sm:$0xff]
    %v208 = vld [vmem:[#allocation9 + $0xe8] sm:$0xff]
    %v209 = vld [vmem:[#allocation9 + $0xf0] sm:$0xff]
    %v210 = vld [vmem:[#allocation9 + $0xf8] sm:$0xff]
    %v211 = vld [vmem:[#allocation9 + $0x100] sm:$0xff]
    %v212 = vld [vmem:[#allocation9 + $0x108] sm:$0xff]
    %v213 = vld [vmem:[#allocation9 + $0x110] sm:$0xff]
    %v214 = vld [vmem:[#allocation9 + $0x118] sm:$0xff]
    %v215 = vld [vmem:[#allocation9 + $0x120] sm:$0xff]
    %v216 = vld [vmem:[#allocation9 + $0x128] sm:$0xff]
    %v217 = vld [vmem:[#allocation9 + $0x130] sm:$0xff]
    %v218 = vld [vmem:[#allocation9 + $0x138] sm:$0xff]
    %v219 = vld [vmem:[#allocation9 + $0x140] sm:$0xff]
    %v220 = vld [vmem:[#allocation9 + $0x148] sm:$0xff]
    %v221 = vld [vmem:[#allocation9 + $0x150] sm:$0xff]
    %v222 = vld [vmem:[#allocation9 + $0x158] sm:$0xff]
    %v223 = vld [vmem:[#allocation9 + $0x160] sm:$0xff]
    %v224 = vld [vmem:[#allocation9 + $0x168] sm:$0xff]
    %v225 = vld [vmem:[#allocation9 + $0x170] sm:$0xff]
    %v226 = vld [vmem:[#allocation9 + $0x178] sm:$0xff]
    %v227 = vld [vmem:[#allocation9 + $0x180] sm:$0xff]
    %v228 = vld [vmem:[#allocation9 + $0x188] sm:$0xff]
    %v229 = vld [vmem:[#allocation9 + $0x190] sm:$0xff]
    %v230 = vld [vmem:[#allocation9 + $0x198] sm:$0xff]
    %v231 = vld [vmem:[#allocation9 + $0x1a0] sm:$0xff]
    %v232 = vld [vmem:[#allocation9 + $0x1a8] sm:$0xff]
    %v233 = vld [vmem:[#allocation9 + $0x1b0] sm:$0xff]
    %v234 = vld [vmem:[#allocation9 + $0x1b8] sm:$0xff]
    %v235 = vld [vmem:[#allocation9 + $0x1c0] sm:$0xff]
    %v236 = vld [vmem:[#allocation9 + $0x1c8] sm:$0xff]
    %v237 = vld [vmem:[#allocation9 + $0x1d0] sm:$0xff]
    %v238 = vld [vmem:[#allocation9 + $0x1d8] sm:$0xff]
    %v239 = vld [vmem:[#allocation9 + $0x1e0] sm:$0xff]
    %v240 = vld [vmem:[#allocation9 + $0x1e8] sm:$0xff]
    %v241 = vld [vmem:[#allocation9 + $0x1f0] sm:$0xff]
    %v242 = vld [vmem:[#allocation9 + $0x1f8] sm:$0xff]
    %v243 = vld [vmem:[#allocation11] sm:$0xff]
    %v245 = vlaneseq
    %v246 = vshrl.u32 %v245, 7
    %v247 = vsub.s32 0, %v246
    %v248 = vrot.slane %v243, %v247
    %v249 = vlaneseq
    %v250 = vshrl.u32 %v249, 7
    %v251 = vsub.s32 1, %v250
    %v252 = vrot.slane %v243, %v251
    %v253 = vlaneseq
    %v254 = vshrl.u32 %v253, 7
    %v255 = vsub.s32 2, %v254
    %v256 = vrot.slane %v243, %v255
    %v257 = vlaneseq
    %v258 = vshrl.u32 %v257, 7
    %v259 = vsub.s32 3, %v258
    %v260 = vrot.slane %v243, %v259
    %v261 = vlaneseq
    %v262 = vshrl.u32 %v261, 7
    %v263 = vsub.s32 4, %v262
    %v264 = vrot.slane %v243, %v263
    %v265 = vlaneseq
    %v266 = vshrl.u32 %v265, 7
    %v267 = vsub.s32 5, %v266
    %v268 = vrot.slane %v243, %v267
    %v269 = vlaneseq
    %v270 = vshrl.u32 %v269, 7
    %v271 = vsub.s32 6, %v270
    %v272 = vrot.slane %v243, %v271
    %v273 = vlaneseq
    %v274 = vshrl.u32 %v273, 7
    %v275 = vsub.s32 7, %v274
    %v276 = vrot.slane %v243, %v275
    %v349 = vunpack.c.l.b16 %v179
    %v350 = vunpack.c.h.b16 %v179
    %v351 = vunpack.c.l.b16 %v180
    %v352 = vunpack.c.h.b16 %v180
    %v353 = vunpack.c.l.b16 %v181
    %v354 = vunpack.c.h.b16 %v181
    %v355 = vunpack.c.l.b16 %v182
    %v356 = vunpack.c.h.b16 %v182
    %v357 = vunpack.c.l.b16 %v183
    %v358 = vunpack.c.h.b16 %v183
    %v359 = vunpack.c.l.b16 %v184
    %v360 = vunpack.c.h.b16 %v184
    %v361 = vunpack.c.l.b16 %v185
    %v362 = vunpack.c.h.b16 %v185
    %v363 = vunpack.c.l.b16 %v186
    %v364 = vunpack.c.h.b16 %v186
    %v365 = vunpack.c.l.b16 %v187
    %v366 = vunpack.c.h.b16 %v187
    %v367 = vunpack.c.l.b16 %v188
    %v368 = vunpack.c.h.b16 %v188
    %v369 = vunpack.c.l.b16 %v189
    %v370 = vunpack.c.h.b16 %v189
    %v371 = vunpack.c.l.b16 %v190
    %v372 = vunpack.c.h.b16 %v190
    %v373 = vunpack.c.l.b16 %v191
    %v374 = vunpack.c.h.b16 %v191
    %v375 = vunpack.c.l.b16 %v192
    %v376 = vunpack.c.h.b16 %v192
    %v377 = vunpack.c.l.b16 %v193
    %v378 = vunpack.c.h.b16 %v193
    %v379 = vunpack.c.l.b16 %v194
    %v380 = vunpack.c.h.b16 %v194
    %v381 = vunpack.c.l.b16 %v195
    %v382 = vunpack.c.h.b16 %v195
    %v383 = vunpack.c.l.b16 %v196
    %v384 = vunpack.c.h.b16 %v196
    %v385 = vunpack.c.l.b16 %v197
    %v386 = vunpack.c.h.b16 %v197
    %v387 = vunpack.c.l.b16 %v198
    %v388 = vunpack.c.h.b16 %v198
    %v389 = vunpack.c.l.b16 %v199
    %v390 = vunpack.c.h.b16 %v199
    %v391 = vunpack.c.l.b16 %v200
    %v392 = vunpack.c.h.b16 %v200
    %v393 = vunpack.c.l.b16 %v201
    %v394 = vunpack.c.h.b16 %v201
    %v395 = vunpack.c.l.b16 %v202
    %v396 = vunpack.c.h.b16 %v202
    %v397 = vunpack.c.l.b16 %v203
    %v398 = vunpack.c.h.b16 %v203
    %v399 = vunpack.c.l.b16 %v204
    %v400 = vunpack.c.h.b16 %v204
    %v401 = vunpack.c.l.b16 %v205
    %v402 = vunpack.c.h.b16 %v205
    %v403 = vunpack.c.l.b16 %v206
    %v404 = vunpack.c.h.b16 %v206
    %v405 = vunpack.c.l.b16 %v207
    %v406 = vunpack.c.h.b16 %v207
    %v407 = vunpack.c.l.b16 %v208
    %v408 = vunpack.c.h.b16 %v208
    %v409 = vunpack.c.l.b16 %v209
    %v410 = vunpack.c.h.b16 %v209
    %v411 = vunpack.c.l.b16 %v210
    %v412 = vunpack.c.h.b16 %v210
    %v413 = vunpack.c.l.b16 %v211
    %v414 = vunpack.c.h.b16 %v211
    %v415 = vunpack.c.l.b16 %v212
    %v416 = vunpack.c.h.b16 %v212
    %v417 = vunpack.c.l.b16 %v213
    %v418 = vunpack.c.h.b16 %v213
    %v419 = vunpack.c.l.b16 %v214
    %v420 = vunpack.c.h.b16 %v214
    %v421 = vunpack.c.l.b16 %v215
    %v422 = vunpack.c.h.b16 %v215
    %v423 = vunpack.c.l.b16 %v216
    %v424 = vunpack.c.h.b16 %v216
    %v425 = vunpack.c.l.b16 %v217
    %v426 = vunpack.c.h.b16 %v217
    %v427 = vunpack.c.l.b16 %v218
    %v428 = vunpack.c.h.b16 %v218
    %v429 = vunpack.c.l.b16 %v219
    %v430 = vunpack.c.h.b16 %v219
    %v431 = vunpack.c.l.b16 %v220
    %v432 = vunpack.c.h.b16 %v220
    %v433 = vunpack.c.l.b16 %v221
    %v434 = vunpack.c.h.b16 %v221
    %v435 = vunpack.c.l.b16 %v222
    %v436 = vunpack.c.h.b16 %v222
    %v437 = vunpack.c.l.b16 %v223
    %v438 = vunpack.c.h.b16 %v223
    %v439 = vunpack.c.l.b16 %v224
    %v440 = vunpack.c.h.b16 %v224
    %v441 = vunpack.c.l.b16 %v225
    %v442 = vunpack.c.h.b16 %v225
    %v443 = vunpack.c.l.b16 %v226
    %v444 = vunpack.c.h.b16 %v226
    %v445 = vunpack.c.l.b16 %v227
    %v446 = vunpack.c.h.b16 %v227
    %v447 = vunpack.c.l.b16 %v228
    %v448 = vunpack.c.h.b16 %v228
    %v449 = vunpack.c.l.b16 %v229
    %v450 = vunpack.c.h.b16 %v229
    %v451 = vunpack.c.l.b16 %v230
    %v452 = vunpack.c.h.b16 %v230
    %v453 = vunpack.c.l.b16 %v231
    %v454 = vunpack.c.h.b16 %v231
    %v455 = vunpack.c.l.b16 %v232
    %v456 = vunpack.c.h.b16 %v232
    %v457 = vunpack.c.l.b16 %v233
    %v458 = vunpack.c.h.b16 %v233
    %v459 = vunpack.c.l.b16 %v234
    %v460 = vunpack.c.h.b16 %v234
    %v461 = vunpack.c.l.b16 %v235
    %v462 = vunpack.c.h.b16 %v235
    %v463 = vunpack.c.l.b16 %v236
    %v464 = vunpack.c.h.b16 %v236
    %v465 = vunpack.c.l.b16 %v237
    %v466 = vunpack.c.h.b16 %v237
    %v467 = vunpack.c.l.b16 %v238
    %v468 = vunpack.c.h.b16 %v238
    %v469 = vunpack.c.l.b16 %v239
    %v470 = vunpack.c.h.b16 %v239
    %v471 = vunpack.c.l.b16 %v240
    %v472 = vunpack.c.h.b16 %v240
    %v473 = vunpack.c.l.b16 %v241
    %v474 = vunpack.c.h.b16 %v241
    %v475 = vunpack.c.l.b16 %v242
    %v476 = vunpack.c.h.b16 %v242
    %v477 = vpack.c.b16 %v357, %v349
    %v478 = vpack.c.b16 %v358, %v350
    %v479 = vpack.c.b16 %v359, %v351
    %v480 = vpack.c.b16 %v360, %v352
    %v481 = vpack.c.b16 %v361, %v353
    %v482 = vpack.c.b16 %v362, %v354
    %v483 = vpack.c.b16 %v363, %v355
    %v484 = vpack.c.b16 %v364, %v356
    %v485 = vpack.c.b16 %v373, %v365
    %v486 = vpack.c.b16 %v374, %v366
    %v487 = vpack.c.b16 %v375, %v367
    %v488 = vpack.c.b16 %v376, %v368
    %v489 = vpack.c.b16 %v377, %v369
    %v490 = vpack.c.b16 %v378, %v370
    %v491 = vpack.c.b16 %v379, %v371
    %v492 = vpack.c.b16 %v380, %v372
    %v493 = vpack.c.b16 %v389, %v381
    %v494 = vpack.c.b16 %v390, %v382
    %v495 = vpack.c.b16 %v391, %v383
    %v496 = vpack.c.b16 %v392, %v384
    %v497 = vpack.c.b16 %v393, %v385
    %v498 = vpack.c.b16 %v394, %v386
    %v499 = vpack.c.b16 %v395, %v387
    %v500 = vpack.c.b16 %v396, %v388
    %v501 = vpack.c.b16 %v405, %v397
    %v502 = vpack.c.b16 %v406, %v398
    %v503 = vpack.c.b16 %v407, %v399
    %v504 = vpack.c.b16 %v408, %v400
    %v505 = vpack.c.b16 %v409, %v401
    %v506 = vpack.c.b16 %v410, %v402
    %v507 = vpack.c.b16 %v411, %v403
    %v508 = vpack.c.b16 %v412, %v404
    %v509 = vpack.c.b16 %v421, %v413
    %v510 = vpack.c.b16 %v422, %v414
    %v511 = vpack.c.b16 %v423, %v415
    %v512 = vpack.c.b16 %v424, %v416
    %v513 = vpack.c.b16 %v425, %v417
    %v514 = vpack.c.b16 %v426, %v418
    %v515 = vpack.c.b16 %v427, %v419
    %v516 = vpack.c.b16 %v428, %v420
    %v517 = vpack.c.b16 %v437, %v429
    %v518 = vpack.c.b16 %v438, %v430
    %v519 = vpack.c.b16 %v439, %v431
    %v520 = vpack.c.b16 %v440, %v432
    %v521 = vpack.c.b16 %v441, %v433
    %v522 = vpack.c.b16 %v442, %v434
    %v523 = vpack.c.b16 %v443, %v435
    %v524 = vpack.c.b16 %v444, %v436
    %v525 = vpack.c.b16 %v453, %v445
    %v526 = vpack.c.b16 %v454, %v446
    %v527 = vpack.c.b16 %v455, %v447
    %v528 = vpack.c.b16 %v456, %v448
    %v529 = vpack.c.b16 %v457, %v449
    %v530 = vpack.c.b16 %v458, %v450
    %v531 = vpack.c.b16 %v459, %v451
    %v532 = vpack.c.b16 %v460, %v452
    %v533 = vpack.c.b16 %v469, %v461
    %v534 = vpack.c.b16 %v470, %v462
    %v535 = vpack.c.b16 %v471, %v463
    %v536 = vpack.c.b16 %v472, %v464
    %v537 = vpack.c.b16 %v473, %v465
    %v538 = vpack.c.b16 %v474, %v466
    %v539 = vpack.c.b16 %v475, %v467
    %v540 = vpack.c.b16 %v476, %v468
    %605 = vmatprep.subr.bf16.mxu0 %v478
    %606 = vmatpush1.bf16.msra.mxu0 %v477
    %607 = vmatprep.subr.bf16.mxu0 %v486
    %608 = vmatpush1.bf16.msra.mxu0 %v485
    %609 = vmatprep.subr.bf16.mxu0 %v494
    %610 = vmatpush1.bf16.msra.mxu0 %v493
    %611 = vmatprep.subr.bf16.mxu0 %v502
    %612 = vmatpush1.bf16.msra.mxu0 %v501
    %613 = vmatprep.subr.bf16.mxu0 %v510
    %614 = vmatpush1.bf16.msra.mxu0 %v509
    %615 = vmatprep.subr.bf16.mxu0 %v518
    %616 = vmatpush1.bf16.msra.mxu0 %v517
    %617 = vmatprep.subr.bf16.mxu0 %v526
    %618 = vmatpush1.bf16.msra.mxu0 %v525
    %619 = vmatprep.subr.bf16.mxu0 %v534
    %620 = vmatpush1.bf16.msra.mxu0 %v533
    %621 = vmatprep.subr.bf16.mxu0 0
    %622 = vmatpush1.bf16.msra.mxu0 0
    %623 = vmatprep.subr.bf16.mxu0 0
    %624 = vmatpush1.bf16.msra.mxu0 0
    %625 = vmatprep.subr.bf16.mxu0 0
    %626 = vmatpush1.bf16.msra.mxu0 0
    %627 = vmatprep.subr.bf16.mxu0 0
    %628 = vmatpush1.bf16.msra.mxu0 0
    %629 = vmatprep.subr.bf16.mxu0 0
    %630 = vmatpush1.bf16.msra.mxu0 0
    %631 = vmatprep.subr.bf16.mxu0 0
    %632 = vmatpush1.bf16.msra.mxu0 0
    %633 = vmatprep.subr.bf16.mxu0 0
    %634 = vmatpush1.bf16.msra.mxu0 0
    %635 = vmatprep.subr.bf16.mxu0 0
    %636 = vmatpush1.bf16.msra.mxu0 0
    %637 = vmatprep.mubr.bf16.mxu0 0
    %638 = vmatmul.mubr.bf16.gmra.mrb[0].mxu0 %v178
    %v639 = vpop.f32.mrb[0].mxu0
    %v640 = vadd.f32 %v248, %v639
    %v641 = vpop.f32.mrb[0].mxu0
    %v642 = vadd.f32 %v252, %v641
    %v643 = vpop.f32.mrb[0].mxu0
    %v644 = vpop.f32.mrb[0].mxu0
    %645 = vdwg.mxu0
    %646 = vmatprep.subr.bf16.mxu0 %v480
    %647 = vmatpush1.bf16.msra.mxu0 %v479
    %648 = vmatprep.subr.bf16.mxu0 %v488
    %649 = vmatpush1.bf16.msra.mxu0 %v487
    %650 = vmatprep.subr.bf16.mxu0 %v496
    %651 = vmatpush1.bf16.msra.mxu0 %v495
    %652 = vmatprep.subr.bf16.mxu0 %v504
    %653 = vmatpush1.bf16.msra.mxu0 %v503
    %654 = vmatprep.subr.bf16.mxu0 %v512
    %655 = vmatpush1.bf16.msra.mxu0 %v511
    %656 = vmatprep.subr.bf16.mxu0 %v520
    %657 = vmatpush1.bf16.msra.mxu0 %v519
    %658 = vmatprep.subr.bf16.mxu0 %v528
    %659 = vmatpush1.bf16.msra.mxu0 %v527
    %660 = vmatprep.subr.bf16.mxu0 %v536
    %661 = vmatpush1.bf16.msra.mxu0 %v535
    %662 = vmatprep.subr.bf16.mxu0 0
    %663 = vmatpush1.bf16.msra.mxu0 0
    %664 = vmatprep.subr.bf16.mxu0 0
    %665 = vmatpush1.bf16.msra.mxu0 0
    %666 = vmatprep.subr.bf16.mxu0 0
    %667 = vmatpush1.bf16.msra.mxu0 0
    %668 = vmatprep.subr.bf16.mxu0 0
    %669 = vmatpush1.bf16.msra.mxu0 0
    %670 = vmatprep.subr.bf16.mxu0 0
    %671 = vmatpush1.bf16.msra.mxu0 0
    %672 = vmatprep.subr.bf16.mxu0 0
    %673 = vmatpush1.bf16.msra.mxu0 0
    %674 = vmatprep.subr.bf16.mxu0 0
    %675 = vmatpush1.bf16.msra.mxu0 0
    %676 = vmatprep.subr.bf16.mxu0 0
    %677 = vmatpush1.bf16.msra.mxu0 0
    %678 = vmatprep.mubr.bf16.mxu0 0
    %679 = vmatmul.mubr.bf16.gmra.mrb[0].mxu0 %v178
    %v680 = vpop.f32.mrb[0].mxu0
    %v681 = vadd.f32 %v256, %v680
    %v682 = vpop.f32.mrb[0].mxu0
    %v683 = vadd.f32 %v260, %v682
    %v684 = vpop.f32.mrb[0].mxu0
    %v685 = vpop.f32.mrb[0].mxu0
    %686 = vdwg.mxu0
    %687 = vmatprep.subr.bf16.mxu0 %v482
    %688 = vmatpush1.bf16.msra.mxu0 %v481
    %689 = vmatprep.subr.bf16.mxu0 %v490
    %690 = vmatpush1.bf16.msra.mxu0 %v489
    %691 = vmatprep.subr.bf16.mxu0 %v498
    %692 = vmatpush1.bf16.msra.mxu0 %v497
    %693 = vmatprep.subr.bf16.mxu0 %v506
    %694 = vmatpush1.bf16.msra.mxu0 %v505
    %695 = vmatprep.subr.bf16.mxu0 %v514
    %696 = vmatpush1.bf16.msra.mxu0 %v513
    %697 = vmatprep.subr.bf16.mxu0 %v522
    %698 = vmatpush1.bf16.msra.mxu0 %v521
    %699 = vmatprep.subr.bf16.mxu0 %v530
    %700 = vmatpush1.bf16.msra.mxu0 %v529
    %701 = vmatprep.subr.bf16.mxu0 %v538
    %702 = vmatpush1.bf16.msra.mxu0 %v537
    %703 = vmatprep.subr.bf16.mxu0 0
    %704 = vmatpush1.bf16.msra.mxu0 0
    %705 = vmatprep.subr.bf16.mxu0 0
    %706 = vmatpush1.bf16.msra.mxu0 0
    %707 = vmatprep.subr.bf16.mxu0 0
    %708 = vmatpush1.bf16.msra.mxu0 0
    %709 = vmatprep.subr.bf16.mxu0 0
    %710 = vmatpush1.bf16.msra.mxu0 0
    %711 = vmatprep.subr.bf16.mxu0 0
    %712 = vmatpush1.bf16.msra.mxu0 0
    %713 = vmatprep.subr.bf16.mxu0 0
    %714 = vmatpush1.bf16.msra.mxu0 0
    %715 = vmatprep.subr.bf16.mxu0 0
    %716 = vmatpush1.bf16.msra.mxu0 0
    %717 = vmatprep.subr.bf16.mxu0 0
    %718 = vmatpush1.bf16.msra.mxu0 0
    %719 = vmatprep.mubr.bf16.mxu0 0
    %720 = vmatmul.mubr.bf16.gmra.mrb[0].mxu0 %v178
    %v721 = vpop.f32.mrb[0].mxu0
    %v722 = vadd.f32 %v264, %v721
    %v723 = vpop.f32.mrb[0].mxu0
    %v724 = vadd.f32 %v268, %v723
    %v725 = vpop.f32.mrb[0].mxu0
    %v726 = vpop.f32.mrb[0].mxu0
    %727 = vdwg.mxu0
    %728 = vmatprep.subr.bf16.mxu0 %v484
    %729 = vmatpush1.bf16.msra.mxu0 %v483
    %730 = vmatprep.subr.bf16.mxu0 %v492
    %731 = vmatpush1.bf16.msra.mxu0 %v491
    %732 = vmatprep.subr.bf16.mxu0 %v500
    %733 = vmatpush1.bf16.msra.mxu0 %v499
    %734 = vmatprep.subr.bf16.mxu0 %v508
    %735 = vmatpush1.bf16.msra.mxu0 %v507
    %736 = vmatprep.subr.bf16.mxu0 %v516
    %737 = vmatpush1.bf16.msra.mxu0 %v515
    %738 = vmatprep.subr.bf16.mxu0 %v524
    %739 = vmatpush1.bf16.msra.mxu0 %v523
    %740 = vmatprep.subr.bf16.mxu0 %v532
    %741 = vmatpush1.bf16.msra.mxu0 %v531
    %742 = vmatprep.subr.bf16.mxu0 %v540
    %743 = vmatpush1.bf16.msra.mxu0 %v539
    %744 = vmatprep.subr.bf16.mxu0 0
    %745 = vmatpush1.bf16.msra.mxu0 0
    %746 = vmatprep.subr.bf16.mxu0 0
    %747 = vmatpush1.bf16.msra.mxu0 0
    %748 = vmatprep.subr.bf16.mxu0 0
    %749 = vmatpush1.bf16.msra.mxu0 0
    %750 = vmatprep.subr.bf16.mxu0 0
    %751 = vmatpush1.bf16.msra.mxu0 0
    %752 = vmatprep.subr.bf16.mxu0 0
    %753 = vmatpush1.bf16.msra.mxu0 0
    %754 = vmatprep.subr.bf16.mxu0 0
    %755 = vmatpush1.bf16.msra.mxu0 0
    %756 = vmatprep.subr.bf16.mxu0 0
    %757 = vmatpush1.bf16.msra.mxu0 0
    %758 = vmatprep.subr.bf16.mxu0 0
    %759 = vmatpush1.bf16.msra.mxu0 0
    %760 = vmatprep.mubr.bf16.mxu0 0
    %761 = vmatmul.mubr.bf16.gmra.mrb[0].mxu0 %v178
    %v762 = vpop.f32.mrb[0].mxu0
    %v763 = vadd.f32 %v272, %v762
    %v764 = vpop.f32.mrb[0].mxu0
    %v765 = vadd.f32 %v276, %v764
    %v766 = vpop.f32.mrb[0].mxu0
    %v767 = vpop.f32.mrb[0].mxu0
    %768 = vdwg.mxu0
    %v769 = vld [vmem:[%s3] sm:$0xff]
    %v770 = vld [vmem:[#allocation12] sm:$0xff]
    %v771 = vrot.slane %v640, 4
    %v772 = vadd.f32 %v640, %v771
    %v773 = vrot.slane %v772, 2
    %v774 = vadd.f32 %v772, %v773
    %v775 = vrot.slane %v774, 1
    %v776 = vadd.f32 %v774, %v775
    %v777 = vrot.slane %v642, 4
    %v778 = vadd.f32 %v642, %v777
    %v779 = vrot.slane %v778, 2
    %v780 = vadd.f32 %v778, %v779
    %v781 = vrot.slane %v780, 1
    %v782 = vadd.f32 %v780, %v781
    %v783 = vrot.slane %v681, 4
    %v784 = vadd.f32 %v681, %v783
    %v785 = vrot.slane %v784, 2
    %v786 = vadd.f32 %v784, %v785
    %v787 = vrot.slane %v786, 1
    %v788 = vadd.f32 %v786, %v787
    %v789 = vrot.slane %v683, 4
    %v790 = vadd.f32 %v683, %v789
    %v791 = vrot.slane %v790, 2
    %v792 = vadd.f32 %v790, %v791
    %v793 = vrot.slane %v792, 1
    %v794 = vadd.f32 %v792, %v793
    %v795 = vrot.slane %v722, 4
    %v796 = vadd.f32 %v722, %v795
    %v797 = vrot.slane %v796, 2
    %v798 = vadd.f32 %v796, %v797
    %v799 = vrot.slane %v798, 1
    %v800 = vadd.f32 %v798, %v799
    %v801 = vrot.slane %v724, 4
    %v802 = vadd.f32 %v724, %v801
    %v803 = vrot.slane %v802, 2
    %v804 = vadd.f32 %v802, %v803
    %v805 = vrot.slane %v804, 1
    %v806 = vadd.f32 %v804, %v805
    %v807 = vrot.slane %v763, 4
    %v808 = vadd.f32 %v763, %v807
    %v809 = vrot.slane %v808, 2
    %v810 = vadd.f32 %v808, %v809
    %v811 = vrot.slane %v810, 1
    %v812 = vadd.f32 %v810, %v811
    %v813 = vrot.slane %v765, 4
    %v814 = vadd.f32 %v765, %v813
    %v815 = vrot.slane %v814, 2
    %v816 = vadd.f32 %v814, %v815
    %v817 = vrot.slane %v816, 1
    %v818 = vadd.f32 %v816, %v817
    %v819 = vrcp.pop 8.0
    %v820 = vmul.f32 %v776, %v819
    %v821 = vmul.f32 %v782, %v819
    %v822 = vmul.f32 %v788, %v819
    %v823 = vmul.f32 %v794, %v819
    %v824 = vmul.f32 %v800, %v819
    %v825 = vmul.f32 %v806, %v819
    %v826 = vmul.f32 %v812, %v819
    %v827 = vmul.f32 %v818, %v819
    %v828 = vsub.f32 %v640, %v820
    %v829 = vsub.f32 %v642, %v821
    %v830 = vsub.f32 %v681, %v822
    %v831 = vsub.f32 %v683, %v823
    %v832 = vsub.f32 %v722, %v824
    %v833 = vsub.f32 %v724, %v825
    %v834 = vsub.f32 %v763, %v826
    %v835 = vsub.f32 %v765, %v827
    %v836 = vmul.f32 %v828, %v828
    %v837 = vmul.f32 %v829, %v829
    %v838 = vmul.f32 %v830, %v830
    %v839 = vmul.f32 %v831, %v831
    %v840 = vmul.f32 %v832, %v832
    %v841 = vmul.f32 %v833, %v833
    %v842 = vmul.f32 %v834, %v834
    %v843 = vmul.f32 %v835, %v835
    %v844 = vrot.slane %v836, 4
    %v845 = vadd.f32 %v836, %v844
    %v846 = vrot.slane %v845, 2
    %v847 = vadd.f32 %v845, %v846
    %v848 = vrot.slane %v847, 1
    %v849 = vadd.f32 %v847, %v848
    %v850 = vrot.slane %v837, 4
    %v851 = vadd.f32 %v837, %v850
    %v852 = vrot.slane %v851, 2
    %v853 = vadd.f32 %v851, %v852
    %v854 = vrot.slane %v853, 1
    %v855 = vadd.f32 %v853, %v854
    %v856 = vrot.slane %v838, 4
    %v857 = vadd.f32 %v838, %v856
    %v858 = vrot.slane %v857, 2
    %v859 = vadd.f32 %v857, %v858
    %v860 = vrot.slane %v859, 1
    %v861 = vadd.f32 %v859, %v860
    %v862 = vrot.slane %v839, 4
    %v863 = vadd.f32 %v839, %v862
    %v864 = vrot.slane %v863, 2
    %v865 = vadd.f32 %v863, %v864
    %v866 = vrot.slane %v865, 1
    %v867 = vadd.f32 %v865, %v866
    %v868 = vrot.slane %v840, 4
    %v869 = vadd.f32 %v840, %v868
    %v870 = vrot.slane %v869, 2
    %v871 = vadd.f32 %v869, %v870
    %v872 = vrot.slane %v871, 1
    %v873 = vadd.f32 %v871, %v872
    %v874 = vrot.slane %v841, 4
    %v875 = vadd.f32 %v841, %v874
    %v876 = vrot.slane %v875, 2
    %v877 = vadd.f32 %v875, %v876
    %v878 = vrot.slane %v877, 1
    %v879 = vadd.f32 %v877, %v878
    %v880 = vrot.slane %v842, 4
    %v881 = vadd.f32 %v842, %v880
    %v882 = vrot.slane %v881, 2
    %v883 = vadd.f32 %v881, %v882
    %v884 = vrot.slane %v883, 1
    %v885 = vadd.f32 %v883, %v884
    %v886 = vrot.slane %v843, 4
    %v887 = vadd.f32 %v843, %v886
    %v888 = vrot.slane %v887, 2
    %v889 = vadd.f32 %v887, %v888
    %v890 = vrot.slane %v889, 1
    %v891 = vadd.f32 %v889, %v890
    %v892 = vmul.f32 %v849, %v819
    %v893 = vmul.f32 %v855, %v819
    %v894 = vmul.f32 %v861, %v819
    %v895 = vmul.f32 %v867, %v819
    %v896 = vmul.f32 %v873, %v819
    %v897 = vmul.f32 %v879, %v819
    %v898 = vmul.f32 %v885, %v819
    %v899 = vmul.f32 %v891, %v819
    %v900 = vadd.f32 %v892, 1e-05
    %v901 = vadd.f32 %v893, 1e-05
    %v902 = vadd.f32 %v894, 1e-05
    %v903 = vadd.f32 %v895, 1e-05
    %v904 = vadd.f32 %v896, 1e-05
    %v905 = vadd.f32 %v897, 1e-05
    %v906 = vadd.f32 %v898, 1e-05
    %v907 = vadd.f32 %v899, 1e-05
    %v908 = vrsqrt.pop %v900
    %v909 = vrsqrt.pop %v901
    %v910 = vrsqrt.pop %v902
    %v911 = vrsqrt.pop %v903
    %v912 = vrsqrt.pop %v904
    %v913 = vrsqrt.pop %v905
    %v914 = vrsqrt.pop %v906
    %v915 = vrsqrt.pop %v907
    %v924 = vcombine.low %v908, %v909
    %v925 = vcombine.low %v910, %v911
    %v926 = vcombine.low %v912, %v913
    %v927 = vcombine.low %v914, %v915
    %v929 = vunpack.c.l.s4 1966171168
    %v930 = vunpack.c.0.s8 %v929
    %v931 = vlaneseq
    %v932 = vshrl.u32 %v931, 7
    %v933 = vsub.s32 %v930, %v932
    %v934 = vrot.slane %v924, %v933
    %v936 = vunpack.c.l.s4 1966171168
    %v937 = vunpack.c.0.s8 %v936
    %v938 = vlaneseq
    %v939 = vshrl.u32 %v938, 7
    %v940 = vsub.s32 %v937, %v939
    %v941 = vrot.slane %v925, %v940
    %v943 = vunpack.c.l.s4 1966171168
    %v944 = vunpack.c.0.s8 %v943
    %v945 = vlaneseq
    %v946 = vshrl.u32 %v945, 7
    %v947 = vsub.s32 %v944, %v946
    %v948 = vrot.slane %v926, %v947
    %v950 = vunpack.c.l.s4 1966171168
    %v951 = vunpack.c.0.s8 %v950
    %v952 = vlaneseq
    %v953 = vshrl.u32 %v952, 7
    %v954 = vsub.s32 %v951, %v953
    %v955 = vrot.slane %v927, %v954
    %v956 = vcombine.low %v934, %v941
    %v957 = vcombine.low %v948, %v955
    %v959 = vunpack.c.l.s4 1966171168
    %v960 = vunpack.c.0.s8 %v959
    %v961 = vlaneseq
    %v962 = vshrl.u32 %v961, 7
    %v963 = vsub.s32 %v960, %v962
    %v964 = vrot.slane %v956, %v963
    %v966 = vunpack.c.l.s4 1966171168
    %v967 = vunpack.c.0.s8 %v966
    %v968 = vlaneseq
    %v969 = vshrl.u32 %v968, 7
    %v970 = vsub.s32 %v967, %v969
    %v971 = vrot.slane %v957, %v970
    %v972 = vcombine.low %v964, %v971
    %v974 = vmul.f32 %v769, %v972
    %v976 = vlaneseq
    %v977 = vshrl.u32 %v976, 7
    %v978 = vsub.s32 0, %v977
    %v979 = vrot.slane %v974, %v978
    %v980 = vlaneseq
    %v981 = vshrl.u32 %v980, 7
    %v982 = vsub.s32 1, %v981
    %v983 = vrot.slane %v974, %v982
    %v984 = vlaneseq
    %v985 = vshrl.u32 %v984, 7
    %v986 = vsub.s32 2, %v985
    %v987 = vrot.slane %v974, %v986
    %v988 = vlaneseq
    %v989 = vshrl.u32 %v988, 7
    %v990 = vsub.s32 3, %v989
    %v991 = vrot.slane %v974, %v990
    %v992 = vlaneseq
    %v993 = vshrl.u32 %v992, 7
    %v994 = vsub.s32 4, %v993
    %v995 = vrot.slane %v974, %v994
    %v996 = vlaneseq
    %v997 = vshrl.u32 %v996, 7
    %v998 = vsub.s32 5, %v997
    %v999 = vrot.slane %v974, %v998
    %v1000 = vlaneseq
    %v1001 = vshrl.u32 %v1000, 7
    %v1002 = vsub.s32 6, %v1001
    %v1003 = vrot.slane %v974, %v1002
    %v1004 = vlaneseq
    %v1005 = vshrl.u32 %v1004, 7
    %v1006 = vsub.s32 7, %v1005
    %v1007 = vrot.slane %v974, %v1006
    %v1016 = vmul.f32 %v820, %v979
    %v1017 = vmul.f32 %v821, %v983
    %v1018 = vmul.f32 %v822, %v987
    %v1019 = vmul.f32 %v823, %v991
    %v1020 = vmul.f32 %v824, %v995
    %v1021 = vmul.f32 %v825, %v999
    %v1022 = vmul.f32 %v826, %v1003
    %v1023 = vmul.f32 %v827, %v1007
    %v1032 = vcombine.low %v1016, %v1017
    %v1033 = vcombine.low %v1018, %v1019
    %v1034 = vcombine.low %v1020, %v1021
    %v1035 = vcombine.low %v1022, %v1023
    %v1037 = vunpack.c.l.s4 1966171168
    %v1038 = vunpack.c.0.s8 %v1037
    %v1039 = vlaneseq
    %v1040 = vshrl.u32 %v1039, 7
    %v1041 = vsub.s32 %v1038, %v1040
    %v1042 = vrot.slane %v1032, %v1041
    %v1044 = vunpack.c.l.s4 1966171168
    %v1045 = vunpack.c.0.s8 %v1044
    %v1046 = vlaneseq
    %v1047 = vshrl.u32 %v1046, 7
    %v1048 = vsub.s32 %v1045, %v1047
    %v1049 = vrot.slane %v1033, %v1048
    %v1051 = vunpack.c.l.s4 1966171168
    %v1052 = vunpack.c.0.s8 %v1051
    %v1053 = vlaneseq
    %v1054 = vshrl.u32 %v1053, 7
    %v1055 = vsub.s32 %v1052, %v1054
    %v1056 = vrot.slane %v1034, %v1055
    %v1058 = vunpack.c.l.s4 1966171168
    %v1059 = vunpack.c.0.s8 %v1058
    %v1060 = vlaneseq
    %v1061 = vshrl.u32 %v1060, 7
    %v1062 = vsub.s32 %v1059, %v1061
    %v1063 = vrot.slane %v1035, %v1062
    %v1064 = vcombine.low %v1042, %v1049
    %v1065 = vcombine.low %v1056, %v1063
    %v1067 = vunpack.c.l.s4 1966171168
    %v1068 = vunpack.c.0.s8 %v1067
    %v1069 = vlaneseq
    %v1070 = vshrl.u32 %v1069, 7
    %v1071 = vsub.s32 %v1068, %v1070
    %v1072 = vrot.slane %v1064, %v1071
    %v1074 = vunpack.c.l.s4 1966171168
    %v1075 = vunpack.c.0.s8 %v1074
    %v1076 = vlaneseq
    %v1077 = vshrl.u32 %v1076, 7
    %v1078 = vsub.s32 %v1075, %v1077
    %v1079 = vrot.slane %v1065, %v1078
    %v1080 = vcombine.low %v1072, %v1079
    %v1082 = vsub.f32 %v770, %v1080
    %v1083 = vmul.f32 %v640, %v979
    %v1084 = vmul.f32 %v642, %v983
    %v1085 = vmul.f32 %v681, %v987
    %v1086 = vmul.f32 %v683, %v991
    %v1087 = vmul.f32 %v722, %v995
    %v1088 = vmul.f32 %v724, %v999
    %v1089 = vmul.f32 %v763, %v1003
    %v1090 = vmul.f32 %v765, %v1007
    %v1092 = vlaneseq
    %v1093 = vshrl.u32 %v1092, 7
    %v1094 = vsub.s32 0, %v1093
    %v1095 = vrot.slane %v1082, %v1094
    %v1096 = vlaneseq
    %v1097 = vshrl.u32 %v1096, 7
    %v1098 = vsub.s32 1, %v1097
    %v1099 = vrot.slane %v1082, %v1098
    %v1100 = vlaneseq
    %v1101 = vshrl.u32 %v1100, 7
    %v1102 = vsub.s32 2, %v1101
    %v1103 = vrot.slane %v1082, %v1102
    %v1104 = vlaneseq
    %v1105 = vshrl.u32 %v1104, 7
    %v1106 = vsub.s32 3, %v1105
    %v1107 = vrot.slane %v1082, %v1106
    %v1108 = vlaneseq
    %v1109 = vshrl.u32 %v1108, 7
    %v1110 = vsub.s32 4, %v1109
    %v1111 = vrot.slane %v1082, %v1110
    %v1112 = vlaneseq
    %v1113 = vshrl.u32 %v1112, 7
    %v1114 = vsub.s32 5, %v1113
    %v1115 = vrot.slane %v1082, %v1114
    %v1116 = vlaneseq
    %v1117 = vshrl.u32 %v1116, 7
    %v1118 = vsub.s32 6, %v1117
    %v1119 = vrot.slane %v1082, %v1118
    %v1120 = vlaneseq
    %v1121 = vshrl.u32 %v1120, 7
    %v1122 = vsub.s32 7, %v1121
    %v1123 = vrot.slane %v1082, %v1122
    %v1132 = vadd.f32 %v1083, %v1095
    %v1133 = vadd.f32 %v1084, %v1099
    %v1134 = vadd.f32 %v1085, %v1103
    %v1135 = vadd.f32 %v1086, %v1107
    %v1136 = vadd.f32 %v1087, %v1111
    %v1137 = vadd.f32 %v1088, %v1115
    %v1138 = vadd.f32 %v1089, %v1119
    %v1139 = vadd.f32 %v1090, %v1123
    %v1140 = vmax.f32 %v1132, 0.0
    %v1141 = vmax.f32 %v1133, 0.0
    %v1142 = vmax.f32 %v1134, 0.0
    %v1143 = vmax.f32 %v1135, 0.0
    %v1144 = vmax.f32 %v1136, 0.0
    %v1145 = vmax.f32 %v1137, 0.0
    %v1146 = vmax.f32 %v1138, 0.0
    %v1147 = vmax.f32 %v1139, 0.0
    %s1148 = smul.u32 4, 128
    %s1149 = smul.u32 %s1148, 4
    %s1150 = sshll.u32 %s1149, 4
    %1151 = dma.done [#allocation5], %s1150
    %v1152 = vpack.c.bf16 %v1140, %v1140
    %v1153 = vpack.c.bf16 %v1141, %v1141
    %v1154 = vpack.c.bf16 %v1142, %v1142
    %v1155 = vpack.c.bf16 %v1143, %v1143
    %v1156 = vpack.c.bf16 %v1144, %v1144
    %v1157 = vpack.c.bf16 %v1145, %v1145
    %v1158 = vpack.c.bf16 %v1146, %v1146
    %v1159 = vpack.c.bf16 %v1147, %v1147
    %v1160 = vld [vmem:[#allocation2] sm:$0xff]
    %v1161 = vld [vmem:[#allocation2 + $0x8] sm:$0xff]
    %v1162 = vld [vmem:[#allocation2 + $0x10] sm:$0xff]
    %v1163 = vld [vmem:[#allocation2 + $0x18] sm:$0xff]
    %v1164 = vld [vmem:[#allocation2 + $0x20] sm:$0xff]
    %v1165 = vld [vmem:[#allocation2 + $0x28] sm:$0xff]
    %v1166 = vld [vmem:[#allocation2 + $0x30] sm:$0xff]
    %v1167 = vld [vmem:[#allocation2 + $0x38] sm:$0xff]
    %v1168 = vld [vmem:[#allocation2 + $0x40] sm:$0xff]
    %v1169 = vld [vmem:[#allocation2 + $0x48] sm:$0xff]
    %v1170 = vld [vmem:[#allocation2 + $0x50] sm:$0xff]
    %v1171 = vld [vmem:[#allocation2 + $0x58] sm:$0xff]
    %v1172 = vld [vmem:[#allocation2 + $0x60] sm:$0xff]
    %v1173 = vld [vmem:[#allocation2 + $0x68] sm:$0xff]
    %v1174 = vld [vmem:[#allocation2 + $0x70] sm:$0xff]
    %v1175 = vld [vmem:[#allocation2 + $0x78] sm:$0xff]
    %v1176 = vld [vmem:[#allocation2 + $0x80] sm:$0xff]
    %v1177 = vld [vmem:[#allocation2 + $0x88] sm:$0xff]
    %v1178 = vld [vmem:[#allocation2 + $0x90] sm:$0xff]
    %v1179 = vld [vmem:[#allocation2 + $0x98] sm:$0xff]
    %v1180 = vld [vmem:[#allocation2 + $0xa0] sm:$0xff]
    %v1181 = vld [vmem:[#allocation2 + $0xa8] sm:$0xff]
    %v1182 = vld [vmem:[#allocation2 + $0xb0] sm:$0xff]
    %v1183 = vld [vmem:[#allocation2 + $0xb8] sm:$0xff]
    %v1184 = vld [vmem:[#allocation2 + $0xc0] sm:$0xff]
    %v1185 = vld [vmem:[#allocation2 + $0xc8] sm:$0xff]
    %v1186 = vld [vmem:[#allocation2 + $0xd0] sm:$0xff]
    %v1187 = vld [vmem:[#allocation2 + $0xd8] sm:$0xff]
    %v1188 = vld [vmem:[#allocation2 + $0xe0] sm:$0xff]
    %v1189 = vld [vmem:[#allocation2 + $0xe8] sm:$0xff]
    %v1190 = vld [vmem:[#allocation2 + $0xf0] sm:$0xff]
    %v1191 = vld [vmem:[#allocation2 + $0xf8] sm:$0xff]
    %v1192 = vld [vmem:[#allocation2 + $0x100] sm:$0xff]
    %v1193 = vld [vmem:[#allocation2 + $0x108] sm:$0xff]
    %v1194 = vld [vmem:[#allocation2 + $0x110] sm:$0xff]
    %v1195 = vld [vmem:[#allocation2 + $0x118] sm:$0xff]
    %v1196 = vld [vmem:[#allocation2 + $0x120] sm:$0xff]
    %v1197 = vld [vmem:[#allocation2 + $0x128] sm:$0xff]
    %v1198 = vld [vmem:[#allocation2 + $0x130] sm:$0xff]
    %v1199 = vld [vmem:[#allocation2 + $0x138] sm:$0xff]
    %v1200 = vld [vmem:[#allocation2 + $0x140] sm:$0xff]
    %v1201 = vld [vmem:[#allocation2 + $0x148] sm:$0xff]
    %v1202 = vld [vmem:[#allocation2 + $0x150] sm:$0xff]
    %v1203 = vld [vmem:[#allocation2 + $0x158] sm:$0xff]
    %v1204 = vld [vmem:[#allocation2 + $0x160] sm:$0xff]
    %v1205 = vld [vmem:[#allocation2 + $0x168] sm:$0xff]
    %v1206 = vld [vmem:[#allocation2 + $0x170] sm:$0xff]
    %v1207 = vld [vmem:[#allocation2 + $0x178] sm:$0xff]
    %v1208 = vld [vmem:[#allocation2 + $0x180] sm:$0xff]
    %v1209 = vld [vmem:[#allocation2 + $0x188] sm:$0xff]
    %v1210 = vld [vmem:[#allocation2 + $0x190] sm:$0xff]
    %v1211 = vld [vmem:[#allocation2 + $0x198] sm:$0xff]
    %v1212 = vld [vmem:[#allocation2 + $0x1a0] sm:$0xff]
    %v1213 = vld [vmem:[#allocation2 + $0x1a8] sm:$0xff]
    %v1214 = vld [vmem:[#allocation2 + $0x1b0] sm:$0xff]
    %v1215 = vld [vmem:[#allocation2 + $0x1b8] sm:$0xff]
    %v1216 = vld [vmem:[#allocation2 + $0x1c0] sm:$0xff]
    %v1217 = vld [vmem:[#allocation2 + $0x1c8] sm:$0xff]
    %v1218 = vld [vmem:[#allocation2 + $0x1d0] sm:$0xff]
    %v1219 = vld [vmem:[#allocation2 + $0x1d8] sm:$0xff]
    %v1220 = vld [vmem:[#allocation2 + $0x1e0] sm:$0xff]
    %v1221 = vld [vmem:[#allocation2 + $0x1e8] sm:$0xff]
    %v1222 = vld [vmem:[#allocation2 + $0x1f0] sm:$0xff]
    %v1223 = vld [vmem:[#allocation2 + $0x1f8] sm:$0xff]
    %v1224 = vld [vmem:[#allocation2 + $0x200] sm:$0xff]
    %v1225 = vld [vmem:[#allocation2 + $0x208] sm:$0xff]
    %v1226 = vld [vmem:[#allocation2 + $0x210] sm:$0xff]
    %v1227 = vld [vmem:[#allocation2 + $0x218] sm:$0xff]
    %v1228 = vld [vmem:[#allocation2 + $0x220] sm:$0xff]
    %v1229 = vld [vmem:[#allocation2 + $0x228] sm:$0xff]
    %v1230 = vld [vmem:[#allocation2 + $0x230] sm:$0xff]
    %v1231 = vld [vmem:[#allocation2 + $0x238] sm:$0xff]
    %v1232 = vld [vmem:[#allocation2 + $0x240] sm:$0xff]
    %v1233 = vld [vmem:[#allocation2 + $0x248] sm:$0xff]
    %v1234 = vld [vmem:[#allocation2 + $0x250] sm:$0xff]
    %v1235 = vld [vmem:[#allocation2 + $0x258] sm:$0xff]
    %v1236 = vld [vmem:[#allocation2 + $0x260] sm:$0xff]
    %v1237 = vld [vmem:[#allocation2 + $0x268] sm:$0xff]
    %v1238 = vld [vmem:[#allocation2 + $0x270] sm:$0xff]
    %v1239 = vld [vmem:[#allocation2 + $0x278] sm:$0xff]
    %v1240 = vld [vmem:[#allocation2 + $0x280] sm:$0xff]
    %v1241 = vld [vmem:[#allocation2 + $0x288] sm:$0xff]
    %v1242 = vld [vmem:[#allocation2 + $0x290] sm:$0xff]
    %v1243 = vld [vmem:[#allocation2 + $0x298] sm:$0xff]
    %v1244 = vld [vmem:[#allocation2 + $0x2a0] sm:$0xff]
    %v1245 = vld [vmem:[#allocation2 + $0x2a8] sm:$0xff]
    %v1246 = vld [vmem:[#allocation2 + $0x2b0] sm:$0xff]
    %v1247 = vld [vmem:[#allocation2 + $0x2b8] sm:$0xff]
    %v1248 = vld [vmem:[#allocation2 + $0x2c0] sm:$0xff]
    %v1249 = vld [vmem:[#allocation2 + $0x2c8] sm:$0xff]
    %v1250 = vld [vmem:[#allocation2 + $0x2d0] sm:$0xff]
    %v1251 = vld [vmem:[#allocation2 + $0x2d8] sm:$0xff]
    %v1252 = vld [vmem:[#allocation2 + $0x2e0] sm:$0xff]
    %v1253 = vld [vmem:[#allocation2 + $0x2e8] sm:$0xff]
    %v1254 = vld [vmem:[#allocation2 + $0x2f0] sm:$0xff]
    %v1255 = vld [vmem:[#allocation2 + $0x2f8] sm:$0xff]
    %v1256 = vld [vmem:[#allocation2 + $0x300] sm:$0xff]
    %v1257 = vld [vmem:[#allocation2 + $0x308] sm:$0xff]
    %v1258 = vld [vmem:[#allocation2 + $0x310] sm:$0xff]
    %v1259 = vld [vmem:[#allocation2 + $0x318] sm:$0xff]
    %v1260 = vld [vmem:[#allocation2 + $0x320] sm:$0xff]
    %v1261 = vld [vmem:[#allocation2 + $0x328] sm:$0xff]
    %v1262 = vld [vmem:[#allocation2 + $0x330] sm:$0xff]
    %v1263 = vld [vmem:[#allocation2 + $0x338] sm:$0xff]
    %v1264 = vld [vmem:[#allocation2 + $0x340] sm:$0xff]
    %v1265 = vld [vmem:[#allocation2 + $0x348] sm:$0xff]
    %v1266 = vld [vmem:[#allocation2 + $0x350] sm:$0xff]
    %v1267 = vld [vmem:[#allocation2 + $0x358] sm:$0xff]
    %v1268 = vld [vmem:[#allocation2 + $0x360] sm:$0xff]
    %v1269 = vld [vmem:[#allocation2 + $0x368] sm:$0xff]
    %v1270 = vld [vmem:[#allocation2 + $0x370] sm:$0xff]
    %v1271 = vld [vmem:[#allocation2 + $0x378] sm:$0xff]
    %v1272 = vld [vmem:[#allocation2 + $0x380] sm:$0xff]
    %v1273 = vld [vmem:[#allocation2 + $0x388] sm:$0xff]
    %v1274 = vld [vmem:[#allocation2 + $0x390] sm:$0xff]
    %v1275 = vld [vmem:[#allocation2 + $0x398] sm:$0xff]
    %v1276 = vld [vmem:[#allocation2 + $0x3a0] sm:$0xff]
    %v1277 = vld [vmem:[#allocation2 + $0x3a8] sm:$0xff]
    %v1278 = vld [vmem:[#allocation2 + $0x3b0] sm:$0xff]
    %v1279 = vld [vmem:[#allocation2 + $0x3b8] sm:$0xff]
    %v1280 = vld [vmem:[#allocation2 + $0x3c0] sm:$0xff]
    %v1281 = vld [vmem:[#allocation2 + $0x3c8] sm:$0xff]
    %v1282 = vld [vmem:[#allocation2 + $0x3d0] sm:$0xff]
    %v1283 = vld [vmem:[#allocation2 + $0x3d8] sm:$0xff]
    %v1284 = vld [vmem:[#allocation2 + $0x3e0] sm:$0xff]
    %v1285 = vld [vmem:[#allocation2 + $0x3e8] sm:$0xff]
    %v1286 = vld [vmem:[#allocation2 + $0x3f0] sm:$0xff]
    %v1287 = vld [vmem:[#allocation2 + $0x3f8] sm:$0xff]
    %v1288 = vld [vmem:[#allocation2 + $0x400] sm:$0xff]
    %v1289 = vld [vmem:[#allocation2 + $0x408] sm:$0xff]
    %v1290 = vld [vmem:[#allocation2 + $0x410] sm:$0xff]
    %v1291 = vld [vmem:[#allocation2 + $0x418] sm:$0xff]
    %v1292 = vld [vmem:[#allocation2 + $0x420] sm:$0xff]
    %v1293 = vld [vmem:[#allocation2 + $0x428] sm:$0xff]
    %v1294 = vld [vmem:[#allocation2 + $0x430] sm:$0xff]
    %v1295 = vld [vmem:[#allocation2 + $0x438] sm:$0xff]
    %v1296 = vld [vmem:[#allocation2 + $0x440] sm:$0xff]
    %v1297 = vld [vmem:[#allocation2 + $0x448] sm:$0xff]
    %v1298 = vld [vmem:[#allocation2 + $0x450] sm:$0xff]
    %v1299 = vld [vmem:[#allocation2 + $0x458] sm:$0xff]
    %v1300 = vld [vmem:[#allocation2 + $0x460] sm:$0xff]
    %v1301 = vld [vmem:[#allocation2 + $0x468] sm:$0xff]
    %v1302 = vld [vmem:[#allocation2 + $0x470] sm:$0xff]
    %v1303 = vld [vmem:[#allocation2 + $0x478] sm:$0xff]
    %v1304 = vld [vmem:[#allocation2 + $0x480] sm:$0xff]
    %v1305 = vld [vmem:[#allocation2 + $0x488] sm:$0xff]
    %v1306 = vld [vmem:[#allocation2 + $0x490] sm:$0xff]
    %v1307 = vld [vmem:[#allocation2 + $0x498] sm:$0xff]
    %v1308 = vld [vmem:[#allocation2 + $0x4a0] sm:$0xff]
    %v1309 = vld [vmem:[#allocation2 + $0x4a8] sm:$0xff]
    %v1310 = vld [vmem:[#allocation2 + $0x4b0] sm:$0xff]
    %v1311 = vld [vmem:[#allocation2 + $0x4b8] sm:$0xff]
    %v1312 = vld [vmem:[#allocation2 + $0x4c0] sm:$0xff]
    %v1313 = vld [vmem:[#allocation2 + $0x4c8] sm:$0xff]
    %v1314 = vld [vmem:[#allocation2 + $0x4d0] sm:$0xff]
    %v1315 = vld [vmem:[#allocation2 + $0x4d8] sm:$0xff]
    %v1316 = vld [vmem:[#allocation2 + $0x4e0] sm:$0xff]
    %v1317 = vld [vmem:[#allocation2 + $0x4e8] sm:$0xff]
    %v1318 = vld [vmem:[#allocation2 + $0x4f0] sm:$0xff]
    %v1319 = vld [vmem:[#allocation2 + $0x4f8] sm:$0xff]
    %v1320 = vld [vmem:[#allocation2 + $0x500] sm:$0xff]
    %v1321 = vld [vmem:[#allocation2 + $0x508] sm:$0xff]
    %v1322 = vld [vmem:[#allocation2 + $0x510] sm:$0xff]
    %v1323 = vld [vmem:[#allocation2 + $0x518] sm:$0xff]
    %v1324 = vld [vmem:[#allocation2 + $0x520] sm:$0xff]
    %v1325 = vld [vmem:[#allocation2 + $0x528] sm:$0xff]
    %v1326 = vld [vmem:[#allocation2 + $0x530] sm:$0xff]
    %v1327 = vld [vmem:[#allocation2 + $0x538] sm:$0xff]
    %v1328 = vld [vmem:[#allocation2 + $0x540] sm:$0xff]
    %v1329 = vld [vmem:[#allocation2 + $0x548] sm:$0xff]
    %v1330 = vld [vmem:[#allocation2 + $0x550] sm:$0xff]
    %v1331 = vld [vmem:[#allocation2 + $0x558] sm:$0xff]
    %v1332 = vld [vmem:[#allocation2 + $0x560] sm:$0xff]
    %v1333 = vld [vmem:[#allocation2 + $0x568] sm:$0xff]
    %v1334 = vld [vmem:[#allocation2 + $0x570] sm:$0xff]
    %v1335 = vld [vmem:[#allocation2 + $0x578] sm:$0xff]
    %v1336 = vld [vmem:[#allocation2 + $0x580] sm:$0xff]
    %v1337 = vld [vmem:[#allocation2 + $0x588] sm:$0xff]
    %v1338 = vld [vmem:[#allocation2 + $0x590] sm:$0xff]
    %v1339 = vld [vmem:[#allocation2 + $0x598] sm:$0xff]
    %v1340 = vld [vmem:[#allocation2 + $0x5a0] sm:$0xff]
    %v1341 = vld [vmem:[#allocation2 + $0x5a8] sm:$0xff]
    %v1342 = vld [vmem:[#allocation2 + $0x5b0] sm:$0xff]
    %v1343 = vld [vmem:[#allocation2 + $0x5b8] sm:$0xff]
    %v1344 = vld [vmem:[#allocation2 + $0x5c0] sm:$0xff]
    %v1345 = vld [vmem:[#allocation2 + $0x5c8] sm:$0xff]
    %v1346 = vld [vmem:[#allocation2 + $0x5d0] sm:$0xff]
    %v1347 = vld [vmem:[#allocation2 + $0x5d8] sm:$0xff]
    %v1348 = vld [vmem:[#allocation2 + $0x5e0] sm:$0xff]
    %v1349 = vld [vmem:[#allocation2 + $0x5e8] sm:$0xff]
    %v1350 = vld [vmem:[#allocation2 + $0x5f0] sm:$0xff]
    %v1351 = vld [vmem:[#allocation2 + $0x5f8] sm:$0xff]
    %v1352 = vld [vmem:[#allocation2 + $0x600] sm:$0xff]
    %v1353 = vld [vmem:[#allocation2 + $0x608] sm:$0xff]
    %v1354 = vld [vmem:[#allocation2 + $0x610] sm:$0xff]
    %v1355 = vld [vmem:[#allocation2 + $0x618] sm:$0xff]
    %v1356 = vld [vmem:[#allocation2 + $0x620] sm:$0xff]
    %v1357 = vld [vmem:[#allocation2 + $0x628] sm:$0xff]
    %v1358 = vld [vmem:[#allocation2 + $0x630] sm:$0xff]
    %v1359 = vld [vmem:[#allocation2 + $0x638] sm:$0xff]
    %v1360 = vld [vmem:[#allocation2 + $0x640] sm:$0xff]
    %v1361 = vld [vmem:[#allocation2 + $0x648] sm:$0xff]
    %v1362 = vld [vmem:[#allocation2 + $0x650] sm:$0xff]
    %v1363 = vld [vmem:[#allocation2 + $0x658] sm:$0xff]
    %v1364 = vld [vmem:[#allocation2 + $0x660] sm:$0xff]
    %v1365 = vld [vmem:[#allocation2 + $0x668] sm:$0xff]
    %v1366 = vld [vmem:[#allocation2 + $0x670] sm:$0xff]
    %v1367 = vld [vmem:[#allocation2 + $0x678] sm:$0xff]
    %v1368 = vld [vmem:[#allocation2 + $0x680] sm:$0xff]
    %v1369 = vld [vmem:[#allocation2 + $0x688] sm:$0xff]
    %v1370 = vld [vmem:[#allocation2 + $0x690] sm:$0xff]
    %v1371 = vld [vmem:[#allocation2 + $0x698] sm:$0xff]
    %v1372 = vld [vmem:[#allocation2 + $0x6a0] sm:$0xff]
    %v1373 = vld [vmem:[#allocation2 + $0x6a8] sm:$0xff]
    %v1374 = vld [vmem:[#allocation2 + $0x6b0] sm:$0xff]
    %v1375 = vld [vmem:[#allocation2 + $0x6b8] sm:$0xff]
    %v1376 = vld [vmem:[#allocation2 + $0x6c0] sm:$0xff]
    %v1377 = vld [vmem:[#allocation2 + $0x6c8] sm:$0xff]
    %v1378 = vld [vmem:[#allocation2 + $0x6d0] sm:$0xff]
    %v1379 = vld [vmem:[#allocation2 + $0x6d8] sm:$0xff]
    %v1380 = vld [vmem:[#allocation2 + $0x6e0] sm:$0xff]
    %v1381 = vld [vmem:[#allocation2 + $0x6e8] sm:$0xff]
    %v1382 = vld [vmem:[#allocation2 + $0x6f0] sm:$0xff]
    %v1383 = vld [vmem:[#allocation2 + $0x6f8] sm:$0xff]
    %v1384 = vld [vmem:[#allocation2 + $0x700] sm:$0xff]
    %v1385 = vld [vmem:[#allocation2 + $0x708] sm:$0xff]
    %v1386 = vld [vmem:[#allocation2 + $0x710] sm:$0xff]
    %v1387 = vld [vmem:[#allocation2 + $0x718] sm:$0xff]
    %v1388 = vld [vmem:[#allocation2 + $0x720] sm:$0xff]
    %v1389 = vld [vmem:[#allocation2 + $0x728] sm:$0xff]
    %v1390 = vld [vmem:[#allocation2 + $0x730] sm:$0xff]
    %v1391 = vld [vmem:[#allocation2 + $0x738] sm:$0xff]
    %v1392 = vld [vmem:[#allocation2 + $0x740] sm:$0xff]
    %v1393 = vld [vmem:[#allocation2 + $0x748] sm:$0xff]
    %v1394 = vld [vmem:[#allocation2 + $0x750] sm:$0xff]
    %v1395 = vld [vmem:[#allocation2 + $0x758] sm:$0xff]
    %v1396 = vld [vmem:[#allocation2 + $0x760] sm:$0xff]
    %v1397 = vld [vmem:[#allocation2 + $0x768] sm:$0xff]
    %v1398 = vld [vmem:[#allocation2 + $0x770] sm:$0xff]
    %v1399 = vld [vmem:[#allocation2 + $0x778] sm:$0xff]
    %v1400 = vld [vmem:[#allocation2 + $0x780] sm:$0xff]
    %v1401 = vld [vmem:[#allocation2 + $0x788] sm:$0xff]
    %v1402 = vld [vmem:[#allocation2 + $0x790] sm:$0xff]
    %v1403 = vld [vmem:[#allocation2 + $0x798] sm:$0xff]
    %v1404 = vld [vmem:[#allocation2 + $0x7a0] sm:$0xff]
    %v1405 = vld [vmem:[#allocation2 + $0x7a8] sm:$0xff]
    %v1406 = vld [vmem:[#allocation2 + $0x7b0] sm:$0xff]
    %v1407 = vld [vmem:[#allocation2 + $0x7b8] sm:$0xff]
    %v1408 = vld [vmem:[#allocation2 + $0x7c0] sm:$0xff]
    %v1409 = vld [vmem:[#allocation2 + $0x7c8] sm:$0xff]
    %v1410 = vld [vmem:[#allocation2 + $0x7d0] sm:$0xff]
    %v1411 = vld [vmem:[#allocation2 + $0x7d8] sm:$0xff]
    %v1412 = vld [vmem:[#allocation2 + $0x7e0] sm:$0xff]
    %v1413 = vld [vmem:[#allocation2 + $0x7e8] sm:$0xff]
    %v1414 = vld [vmem:[#allocation2 + $0x7f0] sm:$0xff]
    %v1415 = vld [vmem:[#allocation2 + $0x7f8] sm:$0xff]
    %v1416 = vld [vmem:[%s6] sm:$0xf]
    %v1418 = vlaneseq
    %v1419 = vshrl.u32 %v1418, 7
    %v1420 = vsub.s32 0, %v1419
    %v1421 = vrot.slane %v1416, %v1420
    %v1422 = vlaneseq
    %v1423 = vshrl.u32 %v1422, 7
    %v1424 = vsub.s32 1, %v1423
    %v1425 = vrot.slane %v1416, %v1424
    %v1426 = vlaneseq
    %v1427 = vshrl.u32 %v1426, 7
    %v1428 = vsub.s32 2, %v1427
    %v1429 = vrot.slane %v1416, %v1428
    %v1430 = vlaneseq
    %v1431 = vshrl.u32 %v1430, 7
    %v1432 = vsub.s32 3, %v1431
    %v1433 = vrot.slane %v1416, %v1432
    %1438 = vmatprep.subr.bf16.mxu0 %v1161
    %1439 = vmatpush1.bf16.msra.mxu0 %v1160
    %1440 = vmatprep.subr.bf16.mxu0 %v1165
    %1441 = vmatpush1.bf16.msra.mxu0 %v1164
    %1442 = vmatprep.subr.bf16.mxu0 %v1169
    %1443 = vmatpush1.bf16.msra.mxu0 %v1168
    %1444 = vmatprep.subr.bf16.mxu0 %v1173
    %1445 = vmatpush1.bf16.msra.mxu0 %v1172
    %1446 = vmatprep.subr.bf16.mxu0 %v1177
    %1447 = vmatpush1.bf16.msra.mxu0 %v1176
    %1448 = vmatprep.subr.bf16.mxu0 %v1181
    %1449 = vmatpush1.bf16.msra.mxu0 %v1180
    %1450 = vmatprep.subr.bf16.mxu0 %v1185
    %1451 = vmatpush1.bf16.msra.mxu0 %v1184
    %1452 = vmatprep.subr.bf16.mxu0 %v1189
    %1453 = vmatpush1.bf16.msra.mxu0 %v1188
    %1454 = vmatprep.subr.bf16.mxu0 %v1193
    %1455 = vmatpush1.bf16.msra.mxu0 %v1192
    %1456 = vmatprep.subr.bf16.mxu0 %v1197
    %1457 = vmatpush1.bf16.msra.mxu0 %v1196
    %1458 = vmatprep.subr.bf16.mxu0 %v1201
    %1459 = vmatpush1.bf16.msra.mxu0 %v1200
    %1460 = vmatprep.subr.bf16.mxu0 %v1205
    %1461 = vmatpush1.bf16.msra.mxu0 %v1204
    %1462 = vmatprep.subr.bf16.mxu0 %v1209
    %1463 = vmatpush1.bf16.msra.mxu0 %v1208
    %1464 = vmatprep.subr.bf16.mxu0 %v1213
    %1465 = vmatpush1.bf16.msra.mxu0 %v1212
    %1466 = vmatprep.subr.bf16.mxu0 %v1217
    %1467 = vmatpush1.bf16.msra.mxu0 %v1216
    %1468 = vmatprep.subr.bf16.mxu0 %v1221
    %1469 = vmatpush1.bf16.msra.mxu0 %v1220
    %1470 = vmatprep.mubr.bf16.mxu0 %v1153
    %1471 = vmatmul.mubr.bf16.gmra.mrb[0].mxu0 %v1152
    %v1472 = vpop.f32.mrb[0].mxu0
    %v1473 = vadd.f32 %v1421, %v1472
    %v1474 = vpop.f32.mrb[0].mxu0
    %v1475 = vadd.f32 %v1425, %v1474
    %v1476 = vpop.f32.mrb[0].mxu0
    %v1477 = vpop.f32.mrb[0].mxu0
    %1478 = vdwg.mxu0
    %1479 = vmatprep.subr.bf16.mxu0 %v1225
    %1480 = vmatpush1.bf16.msra.mxu0 %v1224
    %1481 = vmatprep.subr.bf16.mxu0 %v1229
    %1482 = vmatpush1.bf16.msra.mxu0 %v1228
    %1483 = vmatprep.subr.bf16.mxu0 %v1233
    %1484 = vmatpush1.bf16.msra.mxu0 %v1232
    %1485 = vmatprep.subr.bf16.mxu0 %v1237
    %1486 = vmatpush1.bf16.msra.mxu0 %v1236
    %1487 = vmatprep.subr.bf16.mxu0 %v1241
    %1488 = vmatpush1.bf16.msra.mxu0 %v1240
    %1489 = vmatprep.subr.bf16.mxu0 %v1245
    %1490 = vmatpush1.bf16.msra.mxu0 %v1244
    %1491 = vmatprep.subr.bf16.mxu0 %v1249
    %1492 = vmatpush1.bf16.msra.mxu0 %v1248
    %1493 = vmatprep.subr.bf16.mxu0 %v1253
    %1494 = vmatpush1.bf16.msra.mxu0 %v1252
    %1495 = vmatprep.subr.bf16.mxu0 %v1257
    %1496 = vmatpush1.bf16.msra.mxu0 %v1256
    %1497 = vmatprep.subr.bf16.mxu0 %v1261
    %1498 = vmatpush1.bf16.msra.mxu0 %v1260
    %1499 = vmatprep.subr.bf16.mxu0 %v1265
    %1500 = vmatpush1.bf16.msra.mxu0 %v1264
    %1501 = vmatprep.subr.bf16.mxu0 %v1269
    %1502 = vmatpush1.bf16.msra.mxu0 %v1268
    %1503 = vmatprep.subr.bf16.mxu0 %v1273
    %1504 = vmatpush1.bf16.msra.mxu0 %v1272
    %1505 = vmatprep.subr.bf16.mxu0 %v1277
    %1506 = vmatpush1.bf16.msra.mxu0 %v1276
    %1507 = vmatprep.subr.bf16.mxu0 %v1281
    %1508 = vmatpush1.bf16.msra.mxu0 %v1280
    %1509 = vmatprep.subr.bf16.mxu0 %v1285
    %1510 = vmatpush1.bf16.msra.mxu0 %v1284
    %1511 = vmatprep.mubr.bf16.mxu0 %v1155
    %1512 = vmatmul.mubr.bf16.gmra.mrb[0].mxu0 %v1154
    %v1513 = vpop.f32.mrb[0].mxu0
    %v1514 = vadd.f32 %v1473, %v1513
    %v1515 = vpop.f32.mrb[0].mxu0
    %v1516 = vadd.f32 %v1475, %v1515
    %v1517 = vpop.f32.mrb[0].mxu0
    %v1518 = vpop.f32.mrb[0].mxu0
    %1519 = vdwg.mxu0
    %1520 = vmatprep.subr.bf16.mxu0 %v1289
    %1521 = vmatpush1.bf16.msra.mxu0 %v1288
    %1522 = vmatprep.subr.bf16.mxu0 %v1293
    %1523 = vmatpush1.bf16.msra.mxu0 %v1292
    %1524 = vmatprep.subr.bf16.mxu0 %v1297
    %1525 = vmatpush1.bf16.msra.mxu0 %v1296
    %1526 = vmatprep.subr.bf16.mxu0 %v1301
    %1527 = vmatpush1.bf16.msra.mxu0 %v1300
    %1528 = vmatprep.subr.bf16.mxu0 %v1305
    %1529 = vmatpush1.bf16.msra.mxu0 %v1304
    %1530 = vmatprep.subr.bf16.mxu0 %v1309
    %1531 = vmatpush1.bf16.msra.mxu0 %v1308
    %1532 = vmatprep.subr.bf16.mxu0 %v1313
    %1533 = vmatpush1.bf16.msra.mxu0 %v1312
    %1534 = vmatprep.subr.bf16.mxu0 %v1317
    %1535 = vmatpush1.bf16.msra.mxu0 %v1316
    %1536 = vmatprep.subr.bf16.mxu0 %v1321
    %1537 = vmatpush1.bf16.msra.mxu0 %v1320
    %1538 = vmatprep.subr.bf16.mxu0 %v1325
    %1539 = vmatpush1.bf16.msra.mxu0 %v1324
    %1540 = vmatprep.subr.bf16.mxu0 %v1329
    %1541 = vmatpush1.bf16.msra.mxu0 %v1328
    %1542 = vmatprep.subr.bf16.mxu0 %v1333
    %1543 = vmatpush1.bf16.msra.mxu0 %v1332
    %1544 = vmatprep.subr.bf16.mxu0 %v1337
    %1545 = vmatpush1.bf16.msra.mxu0 %v1336
    %1546 = vmatprep.subr.bf16.mxu0 %v1341
    %1547 = vmatpush1.bf16.msra.mxu0 %v1340
    %1548 = vmatprep.subr.bf16.mxu0 %v1345
    %1549 = vmatpush1.bf16.msra.mxu0 %v1344
    %1550 = vmatprep.subr.bf16.mxu0 %v1349
    %1551 = vmatpush1.bf16.msra.mxu0 %v1348
    %1552 = vmatprep.mubr.bf16.mxu0 %v1157
    %1553 = vmatmul.mubr.bf16.gmra.mrb[0].mxu0 %v1156
    %v1554 = vpop.f32.mrb[0].mxu0
    %v1555 = vadd.f32 %v1514, %v1554
    %v1556 = vpop.f32.mrb[0].mxu0
    %v1557 = vadd.f32 %v1516, %v1556
    %v1558 = vpop.f32.mrb[0].mxu0
    %v1559 = vpop.f32.mrb[0].mxu0
    %1560 = vdwg.mxu0
    %1561 = vmatprep.subr.bf16.mxu0 %v1353
    %1562 = vmatpush1.bf16.msra.mxu0 %v1352
    %1563 = vmatprep.subr.bf16.mxu0 %v1357
    %1564 = vmatpush1.bf16.msra.mxu0 %v1356
    %1565 = vmatprep.subr.bf16.mxu0 %v1361
    %1566 = vmatpush1.bf16.msra.mxu0 %v1360
    %1567 = vmatprep.subr.bf16.mxu0 %v1365
    %1568 = vmatpush1.bf16.msra.mxu0 %v1364
    %1569 = vmatprep.subr.bf16.mxu0 %v1369
    %1570 = vmatpush1.bf16.msra.mxu0 %v1368
    %1571 = vmatprep.subr.bf16.mxu0 %v1373
    %1572 = vmatpush1.bf16.msra.mxu0 %v1372
    %1573 = vmatprep.subr.bf16.mxu0 %v1377
    %1574 = vmatpush1.bf16.msra.mxu0 %v1376
    %1575 = vmatprep.subr.bf16.mxu0 %v1381
    %1576 = vmatpush1.bf16.msra.mxu0 %v1380
    %1577 = vmatprep.subr.bf16.mxu0 %v1385
    %1578 = vmatpush1.bf16.msra.mxu0 %v1384
    %1579 = vmatprep.subr.bf16.mxu0 %v1389
    %1580 = vmatpush1.bf16.msra.mxu0 %v1388
    %1581 = vmatprep.subr.bf16.mxu0 %v1393
    %1582 = vmatpush1.bf16.msra.mxu0 %v1392
    %1583 = vmatprep.subr.bf16.mxu0 %v1397
    %1584 = vmatpush1.bf16.msra.mxu0 %v1396
    %1585 = vmatprep.subr.bf16.mxu0 %v1401
    %1586 = vmatpush1.bf16.msra.mxu0 %v1400
    %1587 = vmatprep.subr.bf16.mxu0 %v1405
    %1588 = vmatpush1.bf16.msra.mxu0 %v1404
    %1589 = vmatprep.subr.bf16.mxu0 %v1409
    %1590 = vmatpush1.bf16.msra.mxu0 %v1408
    %1591 = vmatprep.subr.bf16.mxu0 %v1413
    %1592 = vmatpush1.bf16.msra.mxu0 %v1412
    %1593 = vmatprep.mubr.bf16.mxu0 %v1159
    %1594 = vmatmul.mubr.bf16.gmra.mrb[0].mxu0 %v1158
    %v1595 = vpop.f32.mrb[0].mxu0
    %v1596 = vadd.f32 %v1555, %v1595
    %v1597 = vpop.f32.mrb[0].mxu0
    %v1598 = vadd.f32 %v1557, %v1597
    %v1599 = vpop.f32.mrb[0].mxu0
    %v1600 = vpop.f32.mrb[0].mxu0
    %1601 = vdwg.mxu0
    %1602 = vmatprep.subr.bf16.mxu0 %v1163
    %1603 = vmatpush1.bf16.msra.mxu0 %v1162
    %1604 = vmatprep.subr.bf16.mxu0 %v1167
    %1605 = vmatpush1.bf16.msra.mxu0 %v1166
    %1606 = vmatprep.subr.bf16.mxu0 %v1171
    %1607 = vmatpush1.bf16.msra.mxu0 %v1170
    %1608 = vmatprep.subr.bf16.mxu0 %v1175
    %1609 = vmatpush1.bf16.msra.mxu0 %v1174
    %1610 = vmatprep.subr.bf16.mxu0 %v1179
    %1611 = vmatpush1.bf16.msra.mxu0 %v1178
    %1612 = vmatprep.subr.bf16.mxu0 %v1183
    %1613 = vmatpush1.bf16.msra.mxu0 %v1182
    %1614 = vmatprep.subr.bf16.mxu0 %v1187
    %1615 = vmatpush1.bf16.msra.mxu0 %v1186
    %1616 = vmatprep.subr.bf16.mxu0 %v1191
    %1617 = vmatpush1.bf16.msra.mxu0 %v1190
    %1618 = vmatprep.subr.bf16.mxu0 %v1195
    %1619 = vmatpush1.bf16.msra.mxu0 %v1194
    %1620 = vmatprep.subr.bf16.mxu0 %v1199
    %1621 = vmatpush1.bf16.msra.mxu0 %v1198
    %1622 = vmatprep.subr.bf16.mxu0 %v1203
    %1623 = vmatpush1.bf16.msra.mxu0 %v1202
    %1624 = vmatprep.subr.bf16.mxu0 %v1207
    %1625 = vmatpush1.bf16.msra.mxu0 %v1206
    %1626 = vmatprep.subr.bf16.mxu0 %v1211
    %1627 = vmatpush1.bf16.msra.mxu0 %v1210
    %1628 = vmatprep.subr.bf16.mxu0 %v1215
    %1629 = vmatpush1.bf16.msra.mxu0 %v1214
    %1630 = vmatprep.subr.bf16.mxu0 %v1219
    %1631 = vmatpush1.bf16.msra.mxu0 %v1218
    %1632 = vmatprep.subr.bf16.mxu0 %v1223
    %1633 = vmatpush1.bf16.msra.mxu0 %v1222
    %1634 = vmatprep.mubr.bf16.mxu0 %v1153
    %1635 = vmatmul.mubr.bf16.gmra.mrb[0].mxu0 %v1152
    %v1636 = vpop.f32.mrb[0].mxu0
    %v1637 = vadd.f32 %v1429, %v1636
    %v1638 = vpop.f32.mrb[0].mxu0
    %v1639 = vadd.f32 %v1433, %v1638
    %v1640 = vpop.f32.mrb[0].mxu0
    %v1641 = vpop.f32.mrb[0].mxu0
    %1642 = vdwg.mxu0
    %1643 = vmatprep.subr.bf16.mxu0 %v1227
    %1644 = vmatpush1.bf16.msra.mxu0 %v1226
    %1645 = vmatprep.subr.bf16.mxu0 %v1231
    %1646 = vmatpush1.bf16.msra.mxu0 %v1230
    %1647 = vmatprep.subr.bf16.mxu0 %v1235
    %1648 = vmatpush1.bf16.msra.mxu0 %v1234
    %1649 = vmatprep.subr.bf16.mxu0 %v1239
    %1650 = vmatpush1.bf16.msra.mxu0 %v1238
    %1651 = vmatprep.subr.bf16.mxu0 %v1243
    %1652 = vmatpush1.bf16.msra.mxu0 %v1242
    %1653 = vmatprep.subr.bf16.mxu0 %v1247
    %1654 = vmatpush1.bf16.msra.mxu0 %v1246
    %1655 = vmatprep.subr.bf16.mxu0 %v1251
    %1656 = vmatpush1.bf16.msra.mxu0 %v1250
    %1657 = vmatprep.subr.bf16.mxu0 %v1255
    %1658 = vmatpush1.bf16.msra.mxu0 %v1254
    %1659 = vmatprep.subr.bf16.mxu0 %v1259
    %1660 = vmatpush1.bf16.msra.mxu0 %v1258
    %1661 = vmatprep.subr.bf16.mxu0 %v1263
    %1662 = vmatpush1.bf16.msra.mxu0 %v1262
    %1663 = vmatprep.subr.bf16.mxu0 %v1267
    %1664 = vmatpush1.bf16.msra.mxu0 %v1266
    %1665 = vmatprep.subr.bf16.mxu0 %v1271
    %1666 = vmatpush1.bf16.msra.mxu0 %v1270
    %1667 = vmatprep.subr.bf16.mxu0 %v1275
    %1668 = vmatpush1.bf16.msra.mxu0 %v1274
    %1669 = vmatprep.subr.bf16.mxu0 %v1279
    %1670 = vmatpush1.bf16.msra.mxu0 %v1278
    %1671 = vmatprep.subr.bf16.mxu0 %v1283
    %1672 = vmatpush1.bf16.msra.mxu0 %v1282
    %1673 = vmatprep.subr.bf16.mxu0 %v1287
    %1674 = vmatpush1.bf16.msra.mxu0 %v1286
    %1675 = vmatprep.mubr.bf16.mxu0 %v1155
    %1676 = vmatmul.mubr.bf16.gmra.mrb[0].mxu0 %v1154
    %v1677 = vpop.f32.mrb[0].mxu0
    %v1678 = vadd.f32 %v1637, %v1677
    %v1679 = vpop.f32.mrb[0].mxu0
    %v1680 = vadd.f32 %v1639, %v1679
    %v1681 = vpop.f32.mrb[0].mxu0
    %v1682 = vpop.f32.mrb[0].mxu0
    %1683 = vdwg.mxu0
    %1684 = vmatprep.subr.bf16.mxu0 %v1291
    %1685 = vmatpush1.bf16.msra.mxu0 %v1290
    %1686 = vmatprep.subr.bf16.mxu0 %v1295
    %1687 = vmatpush1.bf16.msra.mxu0 %v1294
    %1688 = vmatprep.subr.bf16.mxu0 %v1299
    %1689 = vmatpush1.bf16.msra.mxu0 %v1298
    %1690 = vmatprep.subr.bf16.mxu0 %v1303
    %1691 = vmatpush1.bf16.msra.mxu0 %v1302
    %1692 = vmatprep.subr.bf16.mxu0 %v1307
    %1693 = vmatpush1.bf16.msra.mxu0 %v1306
    %1694 = vmatprep.subr.bf16.mxu0 %v1311
    %1695 = vmatpush1.bf16.msra.mxu0 %v1310
    %1696 = vmatprep.subr.bf16.mxu0 %v1315
    %1697 = vmatpush1.bf16.msra.mxu0 %v1314
    %1698 = vmatprep.subr.bf16.mxu0 %v1319
    %1699 = vmatpush1.bf16.msra.mxu0 %v1318
    %1700 = vmatprep.subr.bf16.mxu0 %v1323
    %1701 = vmatpush1.bf16.msra.mxu0 %v1322
    %1702 = vmatprep.subr.bf16.mxu0 %v1327
    %1703 = vmatpush1.bf16.msra.mxu0 %v1326
    %1704 = vmatprep.subr.bf16.mxu0 %v1331
    %1705 = vmatpush1.bf16.msra.mxu0 %v1330
    %1706 = vmatprep.subr.bf16.mxu0 %v1335
    %1707 = vmatpush1.bf16.msra.mxu0 %v1334
    %1708 = vmatprep.subr.bf16.mxu0 %v1339
    %1709 = vmatpush1.bf16.msra.mxu0 %v1338
    %1710 = vmatprep.subr.bf16.mxu0 %v1343
    %1711 = vmatpush1.bf16.msra.mxu0 %v1342
    %1712 = vmatprep.subr.bf16.mxu0 %v1347
    %1713 = vmatpush1.bf16.msra.mxu0 %v1346
    %1714 = vmatprep.subr.bf16.mxu0 %v1351
    %1715 = vmatpush1.bf16.msra.mxu0 %v1350
    %1716 = vmatprep.mubr.bf16.mxu0 %v1157
    %1717 = vmatmul.mubr.bf16.gmra.mrb[0].mxu0 %v1156
    %v1718 = vpop.f32.mrb[0].mxu0
    %v1719 = vadd.f32 %v1678, %v1718
    %v1720 = vpop.f32.mrb[0].mxu0
    %v1721 = vadd.f32 %v1680, %v1720
    %v1722 = vpop.f32.mrb[0].mxu0
    %v1723 = vpop.f32.mrb[0].mxu0
    %1724 = vdwg.mxu0
    %1725 = vmatprep.subr.bf16.mxu0 %v1355
    %1726 = vmatpush1.bf16.msra.mxu0 %v1354
    %1727 = vmatprep.subr.bf16.mxu0 %v1359
    %1728 = vmatpush1.bf16.msra.mxu0 %v1358
    %1729 = vmatprep.subr.bf16.mxu0 %v1363
    %1730 = vmatpush1.bf16.msra.mxu0 %v1362
    %1731 = vmatprep.subr.bf16.mxu0 %v1367
    %1732 = vmatpush1.bf16.msra.mxu0 %v1366
    %1733 = vmatprep.subr.bf16.mxu0 %v1371
    %1734 = vmatpush1.bf16.msra.mxu0 %v1370
    %1735 = vmatprep.subr.bf16.mxu0 %v1375
    %1736 = vmatpush1.bf16.msra.mxu0 %v1374
    %1737 = vmatprep.subr.bf16.mxu0 %v1379
    %1738 = vmatpush1.bf16.msra.mxu0 %v1378
    %1739 = vmatprep.subr.bf16.mxu0 %v1383
    %1740 = vmatpush1.bf16.msra.mxu0 %v1382
    %1741 = vmatprep.subr.bf16.mxu0 %v1387
    %1742 = vmatpush1.bf16.msra.mxu0 %v1386
    %1743 = vmatprep.subr.bf16.mxu0 %v1391
    %1744 = vmatpush1.bf16.msra.mxu0 %v1390
    %1745 = vmatprep.subr.bf16.mxu0 %v1395
    %1746 = vmatpush1.bf16.msra.mxu0 %v1394
    %1747 = vmatprep.subr.bf16.mxu0 %v1399
    %1748 = vmatpush1.bf16.msra.mxu0 %v1398
    %1749 = vmatprep.subr.bf16.mxu0 %v1403
    %1750 = vmatpush1.bf16.msra.mxu0 %v1402
    %1751 = vmatprep.subr.bf16.mxu0 %v1407
    %1752 = vmatpush1.bf16.msra.mxu0 %v1406
    %1753 = vmatprep.subr.bf16.mxu0 %v1411
    %1754 = vmatpush1.bf16.msra.mxu0 %v1410
    %1755 = vmatprep.subr.bf16.mxu0 %v1415
    %1756 = vmatpush1.bf16.msra.mxu0 %v1414
    %1757 = vmatprep.mubr.bf16.mxu0 %v1159
    %1758 = vmatmul.mubr.bf16.gmra.mrb[0].mxu0 %v1158
    %v1759 = vpop.f32.mrb[0].mxu0
    %v1760 = vadd.f32 %v1719, %v1759
    %v1761 = vpop.f32.mrb[0].mxu0
    %v1762 = vadd.f32 %v1721, %v1761
    %v1763 = vpop.f32.mrb[0].mxu0
    %v1764 = vpop.f32.mrb[0].mxu0
    %1765 = vdwg.mxu0
    %v1766 = vld [vmem:[%s7] sm:$0xf]
    %v1767 = vld [vmem:[%s8] sm:$0xf]
    %v1768 = vrot.slane %v1596, 4
    %v1769 = vadd.f32 %v1596, %v1768
    %v1770 = vrot.slane %v1769, 2
    %v1771 = vadd.f32 %v1769, %v1770
    %v1772 = vrot.slane %v1771, 1
    %v1773 = vadd.f32 %v1771, %v1772
    %v1774 = vrot.slane %v1598, 4
    %v1775 = vadd.f32 %v1598, %v1774
    %v1776 = vrot.slane %v1775, 2
    %v1777 = vadd.f32 %v1775, %v1776
    %v1778 = vrot.slane %v1777, 1
    %v1779 = vadd.f32 %v1777, %v1778
    %v1780 = vrot.slane %v1760, 4
    %v1781 = vadd.f32 %v1760, %v1780
    %v1782 = vrot.slane %v1781, 2
    %v1783 = vadd.f32 %v1781, %v1782
    %v1784 = vrot.slane %v1783, 1
    %v1785 = vadd.f32 %v1783, %v1784
    %v1786 = vrot.slane %v1762, 4
    %v1787 = vadd.f32 %v1762, %v1786
    %v1788 = vrot.slane %v1787, 2
    %v1789 = vadd.f32 %v1787, %v1788
    %v1790 = vrot.slane %v1789, 1
    %v1791 = vadd.f32 %v1789, %v1790
    %v1792 = vmul.f32 %v1773, %v819
    %v1793 = vmul.f32 %v1779, %v819
    %v1794 = vmul.f32 %v1785, %v819
    %v1795 = vmul.f32 %v1791, %v819
    %v1796 = vsub.f32 %v1596, %v1792
    %v1797 = vsub.f32 %v1598, %v1793
    %v1798 = vsub.f32 %v1760, %v1794
    %v1799 = vsub.f32 %v1762, %v1795
    %v1800 = vmul.f32 %v1796, %v1796
    %v1801 = vmul.f32 %v1797, %v1797
    %v1802 = vmul.f32 %v1798, %v1798
    %v1803 = vmul.f32 %v1799, %v1799
    %v1804 = vrot.slane %v1800, 4
    %v1805 = vadd.f32 %v1800, %v1804
    %v1806 = vrot.slane %v1805, 2
    %v1807 = vadd.f32 %v1805, %v1806
    %v1808 = vrot.slane %v1807, 1
    %v1809 = vadd.f32 %v1807, %v1808
    %v1810 = vrot.slane %v1801, 4
    %v1811 = vadd.f32 %v1801, %v1810
    %v1812 = vrot.slane %v1811, 2
    %v1813 = vadd.f32 %v1811, %v1812
    %v1814 = vrot.slane %v1813, 1
    %v1815 = vadd.f32 %v1813, %v1814
    %v1816 = vrot.slane %v1802, 4
    %v1817 = vadd.f32 %v1802, %v1816
    %v1818 = vrot.slane %v1817, 2
    %v1819 = vadd.f32 %v1817, %v1818
    %v1820 = vrot.slane %v1819, 1
    %v1821 = vadd.f32 %v1819, %v1820
    %v1822 = vrot.slane %v1803, 4
    %v1823 = vadd.f32 %v1803, %v1822
    %v1824 = vrot.slane %v1823, 2
    %v1825 = vadd.f32 %v1823, %v1824
    %v1826 = vrot.slane %v1825, 1
    %v1827 = vadd.f32 %v1825, %v1826
    %v1828 = vmul.f32 %v1809, %v819
    %v1829 = vmul.f32 %v1815, %v819
    %v1830 = vmul.f32 %v1821, %v819
    %v1831 = vmul.f32 %v1827, %v819
    %v1832 = vadd.f32 %v1828, 1e-05
    %v1833 = vadd.f32 %v1829, 1e-05
    %v1834 = vadd.f32 %v1830, 1e-05
    %v1835 = vadd.f32 %v1831, 1e-05
    %v1836 = vrsqrt.pop %v1832
    %v1837 = vrsqrt.pop %v1833
    %v1838 = vrsqrt.pop %v1834
    %v1839 = vrsqrt.pop %v1835
    %v1844 = vcombine.low %v1836, %v1837
    %v1845 = vcombine.low %v1838, %v1839
    %v1847 = vunpack.c.l.s4 1966171168
    %v1848 = vunpack.c.0.s8 %v1847
    %v1849 = vlaneseq
    %v1850 = vshrl.u32 %v1849, 7
    %v1851 = vsub.s32 %v1848, %v1850
    %v1852 = vrot.slane %v1844, %v1851
    %v1854 = vunpack.c.l.s4 1966171168
    %v1855 = vunpack.c.0.s8 %v1854
    %v1856 = vlaneseq
    %v1857 = vshrl.u32 %v1856, 7
    %v1858 = vsub.s32 %v1855, %v1857
    %v1859 = vrot.slane %v1845, %v1858
    %v1860 = vcombine.low %v1852, %v1859
    %v1862 = vunpack.c.l.s4 1966171168
    %v1863 = vunpack.c.0.s8 %v1862
    %v1864 = vlaneseq
    %v1865 = vshrl.u32 %v1864, 7
    %v1866 = vsub.s32 %v1863, %v1865
    %v1867 = vrot.slane %v1860, %v1866
    %v1869 = vmul.f32 %v1766, %v1867
    %v1871 = vlaneseq
    %v1872 = vshrl.u32 %v1871, 7
    %v1873 = vsub.s32 0, %v1872
    %v1874 = vrot.slane %v1869, %v1873
    %v1875 = vlaneseq
    %v1876 = vshrl.u32 %v1875, 7
    %v1877 = vsub.s32 1, %v1876
    %v1878 = vrot.slane %v1869, %v1877
    %v1879 = vlaneseq
    %v1880 = vshrl.u32 %v1879, 7
    %v1881 = vsub.s32 2, %v1880
    %v1882 = vrot.slane %v1869, %v1881
    %v1883 = vlaneseq
    %v1884 = vshrl.u32 %v1883, 7
    %v1885 = vsub.s32 3, %v1884
    %v1886 = vrot.slane %v1869, %v1885
    %v1891 = vmul.f32 %v1792, %v1874
    %v1892 = vmul.f32 %v1793, %v1878
    %v1893 = vmul.f32 %v1794, %v1882
    %v1894 = vmul.f32 %v1795, %v1886
    %v1899 = vcombine.low %v1891, %v1892
    %v1900 = vcombine.low %v1893, %v1894
    %v1902 = vunpack.c.l.s4 1966171168
    %v1903 = vunpack.c.0.s8 %v1902
    %v1904 = vlaneseq
    %v1905 = vshrl.u32 %v1904, 7
    %v1906 = vsub.s32 %v1903, %v1905
    %v1907 = vrot.slane %v1899, %v1906
    %v1909 = vunpack.c.l.s4 1966171168
    %v1910 = vunpack.c.0.s8 %v1909
    %v1911 = vlaneseq
    %v1912 = vshrl.u32 %v1911, 7
    %v1913 = vsub.s32 %v1910, %v1912
    %v1914 = vrot.slane %v1900, %v1913
    %v1915 = vcombine.low %v1907, %v1914
    %v1917 = vunpack.c.l.s4 1966171168
    %v1918 = vunpack.c.0.s8 %v1917
    %v1919 = vlaneseq
    %v1920 = vshrl.u32 %v1919, 7
    %v1921 = vsub.s32 %v1918, %v1920
    %v1922 = vrot.slane %v1915, %v1921
    %v1924 = vsub.f32 %v1767, %v1922
    %v1925 = vmul.f32 %v1596, %v1874
    %v1926 = vmul.f32 %v1598, %v1878
    %v1927 = vmul.f32 %v1760, %v1882
    %v1928 = vmul.f32 %v1762, %v1886
    %v1930 = vlaneseq
    %v1931 = vshrl.u32 %v1930, 7
    %v1932 = vsub.s32 0, %v1931
    %v1933 = vrot.slane %v1924, %v1932
    %v1934 = vlaneseq
    %v1935 = vshrl.u32 %v1934, 7
    %v1936 = vsub.s32 1, %v1935
    %v1937 = vrot.slane %v1924, %v1936
    %v1938 = vlaneseq
    %v1939 = vshrl.u32 %v1938, 7
    %v1940 = vsub.s32 2, %v1939
    %v1941 = vrot.slane %v1924, %v1940
    %v1942 = vlaneseq
    %v1943 = vshrl.u32 %v1942, 7
    %v1944 = vsub.s32 3, %v1943
    %v1945 = vrot.slane %v1924, %v1944
    %v1950 = vadd.f32 %v1925, %v1933
    %v1951 = vadd.f32 %v1926, %v1937
    %v1952 = vadd.f32 %v1927, %v1941
    %v1953 = vadd.f32 %v1928, %v1945
    %v1954 = vmax.f32 %v1950, 0.0
    %v1955 = vmax.f32 %v1951, 0.0
    %v1956 = vmax.f32 %v1952, 0.0
    %v1957 = vmax.f32 %v1953, 0.0
    %s1958 = smul.u32 4, 64
    %s1959 = smul.u32 %s1958, 2
    %s1960 = sshll.u32 %s1959, 4
    %1961 = dma.done %s130, %s1960
    %v1962 = vpack.c.bf16 %v1954, %v1954
    %v1963 = vpack.c.bf16 %v1955, %v1955
    %v1964 = vpack.c.bf16 %v1956, %v1956
    %v1965 = vpack.c.bf16 %v1957, %v1957
    %v1966 = vld [vmem:[#allocation3] sm:$0xff]
    %v1967 = vld [vmem:[#allocation3 + $0x8] sm:$0xff]
    %v1968 = vld [vmem:[#allocation3 + $0x10] sm:$0xff]
    %v1969 = vld [vmem:[#allocation3 + $0x18] sm:$0xff]
    %v1970 = vld [vmem:[#allocation3 + $0x20] sm:$0xff]
    %v1971 = vld [vmem:[#allocation3 + $0x28] sm:$0xff]
    %v1972 = vld [vmem:[#allocation3 + $0x30] sm:$0xff]
    %v1973 = vld [vmem:[#allocation3 + $0x38] sm:$0xff]
    %v1974 = vld [vmem:[#allocation3 + $0x40] sm:$0xff]
    %v1975 = vld [vmem:[#allocation3 + $0x48] sm:$0xff]
    %v1976 = vld [vmem:[#allocation3 + $0x50] sm:$0xff]
    %v1977 = vld [vmem:[#allocation3 + $0x58] sm:$0xff]
    %v1978 = vld [vmem:[#allocation3 + $0x60] sm:$0xff]
    %v1979 = vld [vmem:[#allocation3 + $0x68] sm:$0xff]
    %v1980 = vld [vmem:[#allocation3 + $0x70] sm:$0xff]
    %v1981 = vld [vmem:[#allocation3 + $0x78] sm:$0xff]
    %v1982 = vld [vmem:[#allocation3 + $0x80] sm:$0xff]
    %v1983 = vld [vmem:[#allocation3 + $0x88] sm:$0xff]
    %v1984 = vld [vmem:[#allocation3 + $0x90] sm:$0xff]
    %v1985 = vld [vmem:[#allocation3 + $0x98] sm:$0xff]
    %v1986 = vld [vmem:[#allocation3 + $0xa0] sm:$0xff]
    %v1987 = vld [vmem:[#allocation3 + $0xa8] sm:$0xff]
    %v1988 = vld [vmem:[#allocation3 + $0xb0] sm:$0xff]
    %v1989 = vld [vmem:[#allocation3 + $0xb8] sm:$0xff]
    %v1990 = vld [vmem:[#allocation3 + $0xc0] sm:$0xff]
    %v1991 = vld [vmem:[#allocation3 + $0xc8] sm:$0xff]
    %v1992 = vld [vmem:[#allocation3 + $0xd0] sm:$0xff]
    %v1993 = vld [vmem:[#allocation3 + $0xd8] sm:$0xff]
    %v1994 = vld [vmem:[#allocation3 + $0xe0] sm:$0xff]
    %v1995 = vld [vmem:[#allocation3 + $0xe8] sm:$0xff]
    %v1996 = vld [vmem:[#allocation3 + $0xf0] sm:$0xff]
    %v1997 = vld [vmem:[#allocation3 + $0xf8] sm:$0xff]
    %v1998 = vld [vmem:[#allocation3 + $0x100] sm:$0xff]
    %v1999 = vld [vmem:[#allocation3 + $0x108] sm:$0xff]
    %v2000 = vld [vmem:[#allocation3 + $0x110] sm:$0xff]
    %v2001 = vld [vmem:[#allocation3 + $0x118] sm:$0xff]
    %v2002 = vld [vmem:[#allocation3 + $0x120] sm:$0xff]
    %v2003 = vld [vmem:[#allocation3 + $0x128] sm:$0xff]
    %v2004 = vld [vmem:[#allocation3 + $0x130] sm:$0xff]
    %v2005 = vld [vmem:[#allocation3 + $0x138] sm:$0xff]
    %v2006 = vld [vmem:[#allocation3 + $0x140] sm:$0xff]
    %v2007 = vld [vmem:[#allocation3 + $0x148] sm:$0xff]
    %v2008 = vld [vmem:[#allocation3 + $0x150] sm:$0xff]
    %v2009 = vld [vmem:[#allocation3 + $0x158] sm:$0xff]
    %v2010 = vld [vmem:[#allocation3 + $0x160] sm:$0xff]
    %v2011 = vld [vmem:[#allocation3 + $0x168] sm:$0xff]
    %v2012 = vld [vmem:[#allocation3 + $0x170] sm:$0xff]
    %v2013 = vld [vmem:[#allocation3 + $0x178] sm:$0xff]
    %v2014 = vld [vmem:[#allocation3 + $0x180] sm:$0xff]
    %v2015 = vld [vmem:[#allocation3 + $0x188] sm:$0xff]
    %v2016 = vld [vmem:[#allocation3 + $0x190] sm:$0xff]
    %v2017 = vld [vmem:[#allocation3 + $0x198] sm:$0xff]
    %v2018 = vld [vmem:[#allocation3 + $0x1a0] sm:$0xff]
    %v2019 = vld [vmem:[#allocation3 + $0x1a8] sm:$0xff]
    %v2020 = vld [vmem:[#allocation3 + $0x1b0] sm:$0xff]
    %v2021 = vld [vmem:[#allocation3 + $0x1b8] sm:$0xff]
    %v2022 = vld [vmem:[#allocation3 + $0x1c0] sm:$0xff]
    %v2023 = vld [vmem:[#allocation3 + $0x1c8] sm:$0xff]
    %v2024 = vld [vmem:[#allocation3 + $0x1d0] sm:$0xff]
    %v2025 = vld [vmem:[#allocation3 + $0x1d8] sm:$0xff]
    %v2026 = vld [vmem:[#allocation3 + $0x1e0] sm:$0xff]
    %v2027 = vld [vmem:[#allocation3 + $0x1e8] sm:$0xff]
    %v2028 = vld [vmem:[#allocation3 + $0x1f0] sm:$0xff]
    %v2029 = vld [vmem:[#allocation3 + $0x1f8] sm:$0xff]
    %v2030 = vld [vmem:[%s10] sm:$0x3]
    %v2032 = vlaneseq
    %v2033 = vshrl.u32 %v2032, 7
    %v2034 = vsub.s32 0, %v2033
    %v2035 = vrot.slane %v2030, %v2034
    %v2036 = vlaneseq
    %v2037 = vshrl.u32 %v2036, 7
    %v2038 = vsub.s32 1, %v2037
    %v2039 = vrot.slane %v2030, %v2038
    %2042 = vmatprep.subr.bf16.mxu0 %v1967
    %2043 = vmatpush1.bf16.msra.mxu0 %v1966
    %2044 = vmatprep.subr.bf16.mxu0 %v1969
    %2045 = vmatpush1.bf16.msra.mxu0 %v1968
    %2046 = vmatprep.subr.bf16.mxu0 %v1971
    %2047 = vmatpush1.bf16.msra.mxu0 %v1970
    %2048 = vmatprep.subr.bf16.mxu0 %v1973
    %2049 = vmatpush1.bf16.msra.mxu0 %v1972
    %2050 = vmatprep.subr.bf16.mxu0 %v1975
    %2051 = vmatpush1.bf16.msra.mxu0 %v1974
    %2052 = vmatprep.subr.bf16.mxu0 %v1977
    %2053 = vmatpush1.bf16.msra.mxu0 %v1976
    %2054 = vmatprep.subr.bf16.mxu0 %v1979
    %2055 = vmatpush1.bf16.msra.mxu0 %v1978
    %2056 = vmatprep.subr.bf16.mxu0 %v1981
    %2057 = vmatpush1.bf16.msra.mxu0 %v1980
    %2058 = vmatprep.subr.bf16.mxu0 %v1983
    %2059 = vmatpush1.bf16.msra.mxu0 %v1982
    %2060 = vmatprep.subr.bf16.mxu0 %v1985
    %2061 = vmatpush1.bf16.msra.mxu0 %v1984
    %2062 = vmatprep.subr.bf16.mxu0 %v1987
    %2063 = vmatpush1.bf16.msra.mxu0 %v1986
    %2064 = vmatprep.subr.bf16.mxu0 %v1989
    %2065 = vmatpush1.bf16.msra.mxu0 %v1988
    %2066 = vmatprep.subr.bf16.mxu0 %v1991
    %2067 = vmatpush1.bf16.msra.mxu0 %v1990
    %2068 = vmatprep.subr.bf16.mxu0 %v1993
    %2069 = vmatpush1.bf16.msra.mxu0 %v1992
    %2070 = vmatprep.subr.bf16.mxu0 %v1995
    %2071 = vmatpush1.bf16.msra.mxu0 %v1994
    %2072 = vmatprep.subr.bf16.mxu0 %v1997
    %2073 = vmatpush1.bf16.msra.mxu0 %v1996
    %2074 = vmatprep.mubr.bf16.mxu0 %v1963
    %2075 = vmatmul.mubr.bf16.gmra.mrb[0].mxu0 %v1962
    %v2076 = vpop.f32.mrb[0].mxu0
    %v2077 = vadd.f32 %v2035, %v2076
    %v2078 = vpop.f32.mrb[0].mxu0
    %v2079 = vadd.f32 %v2039, %v2078
    %v2080 = vpop.f32.mrb[0].mxu0
    %v2081 = vpop.f32.mrb[0].mxu0
    %2082 = vdwg.mxu0
    %2083 = vmatprep.subr.bf16.mxu0 %v1999
    %2084 = vmatpush1.bf16.msra.mxu0 %v1998
    %2085 = vmatprep.subr.bf16.mxu0 %v2001
    %2086 = vmatpush1.bf16.msra.mxu0 %v2000
    %2087 = vmatprep.subr.bf16.mxu0 %v2003
    %2088 = vmatpush1.bf16.msra.mxu0 %v2002
    %2089 = vmatprep.subr.bf16.mxu0 %v2005
    %2090 = vmatpush1.bf16.msra.mxu0 %v2004
    %2091 = vmatprep.subr.bf16.mxu0 %v2007
    %2092 = vmatpush1.bf16.msra.mxu0 %v2006
    %2093 = vmatprep.subr.bf16.mxu0 %v2009
    %2094 = vmatpush1.bf16.msra.mxu0 %v2008
    %2095 = vmatprep.subr.bf16.mxu0 %v2011
    %2096 = vmatpush1.bf16.msra.mxu0 %v2010
    %2097 = vmatprep.subr.bf16.mxu0 %v2013
    %2098 = vmatpush1.bf16.msra.mxu0 %v2012
    %2099 = vmatprep.subr.bf16.mxu0 %v2015
    %2100 = vmatpush1.bf16.msra.mxu0 %v2014
    %2101 = vmatprep.subr.bf16.mxu0 %v2017
    %2102 = vmatpush1.bf16.msra.mxu0 %v2016
    %2103 = vmatprep.subr.bf16.mxu0 %v2019
    %2104 = vmatpush1.bf16.msra.mxu0 %v2018
    %2105 = vmatprep.subr.bf16.mxu0 %v2021
    %2106 = vmatpush1.bf16.msra.mxu0 %v2020
    %2107 = vmatprep.subr.bf16.mxu0 %v2023
    %2108 = vmatpush1.bf16.msra.mxu0 %v2022
    %2109 = vmatprep.subr.bf16.mxu0 %v2025
    %2110 = vmatpush1.bf16.msra.mxu0 %v2024
    %2111 = vmatprep.subr.bf16.mxu0 %v2027
    %2112 = vmatpush1.bf16.msra.mxu0 %v2026
    %2113 = vmatprep.subr.bf16.mxu0 %v2029
    %2114 = vmatpush1.bf16.msra.mxu0 %v2028
    %2115 = vmatprep.mubr.bf16.mxu0 %v1965
    %2116 = vmatmul.mubr.bf16.gmra.mrb[0].mxu0 %v1964
    %v2117 = vpop.f32.mrb[0].mxu0
    %v2118 = vadd.f32 %v2077, %v2117
    %v2119 = vpop.f32.mrb[0].mxu0
    %v2120 = vadd.f32 %v2079, %v2119
    %v2121 = vpop.f32.mrb[0].mxu0
    %v2122 = vpop.f32.mrb[0].mxu0
    %2123 = vdwg.mxu0
    %v2124 = vld [vmem:[%s11] sm:$0x3]
    %v2125 = vld [vmem:[%s12] sm:$0x3]
    %v2126 = vrot.slane %v2118, 4
    %v2127 = vadd.f32 %v2118, %v2126
    %v2128 = vrot.slane %v2127, 2
    %v2129 = vadd.f32 %v2127, %v2128
    %v2130 = vrot.slane %v2129, 1
    %v2131 = vadd.f32 %v2129, %v2130
    %v2132 = vrot.slane %v2120, 4
    %v2133 = vadd.f32 %v2120, %v2132
    %v2134 = vrot.slane %v2133, 2
    %v2135 = vadd.f32 %v2133, %v2134
    %v2136 = vrot.slane %v2135, 1
    %v2137 = vadd.f32 %v2135, %v2136
    %v2138 = vmul.f32 %v2131, %v819
    %v2139 = vmul.f32 %v2137, %v819
    %v2140 = vsub.f32 %v2118, %v2138
    %v2141 = vsub.f32 %v2120, %v2139
    %v2142 = vmul.f32 %v2140, %v2140
    %v2143 = vmul.f32 %v2141, %v2141
    %v2144 = vrot.slane %v2142, 4
    %v2145 = vadd.f32 %v2142, %v2144
    %v2146 = vrot.slane %v2145, 2
    %v2147 = vadd.f32 %v2145, %v2146
    %v2148 = vrot.slane %v2147, 1
    %v2149 = vadd.f32 %v2147, %v2148
    %v2150 = vrot.slane %v2143, 4
    %v2151 = vadd.f32 %v2143, %v2150
    %v2152 = vrot.slane %v2151, 2
    %v2153 = vadd.f32 %v2151, %v2152
    %v2154 = vrot.slane %v2153, 1
    %v2155 = vadd.f32 %v2153, %v2154
    %v2156 = vmul.f32 %v2149, %v819
    %v2157 = vmul.f32 %v2155, %v819
    %v2158 = vadd.f32 %v2156, 1e-05
    %v2159 = vadd.f32 %v2157, 1e-05
    %v2160 = vrsqrt.pop %v2158
    %v2161 = vrsqrt.pop %v2159
    %v2164 = vcombine.low %v2160, %v2161
    %v2166 = vunpack.c.l.s4 1966171168
    %v2167 = vunpack.c.0.s8 %v2166
    %v2168 = vlaneseq
    %v2169 = vshrl.u32 %v2168, 7
    %v2170 = vsub.s32 %v2167, %v2169
    %v2171 = vrot.slane %v2164, %v2170
    %v2173 = vunpack.c.l.s4 1966171168
    %v2174 = vunpack.c.0.s8 %v2173
    %v2175 = vlaneseq
    %v2176 = vshrl.u32 %v2175, 7
    %v2177 = vsub.s32 %v2174, %v2176
    %v2178 = vrot.slane %v2171, %v2177
    %v2180 = vmul.f32 %v2124, %v2178
    %v2182 = vlaneseq
    %v2183 = vshrl.u32 %v2182, 7
    %v2184 = vsub.s32 0, %v2183
    %v2185 = vrot.slane %v2180, %v2184
    %v2186 = vlaneseq
    %v2187 = vshrl.u32 %v2186, 7
    %v2188 = vsub.s32 1, %v2187
    %v2189 = vrot.slane %v2180, %v2188
    %v2192 = vmul.f32 %v2138, %v2185
    %v2193 = vmul.f32 %v2139, %v2189
    %v2196 = vcombine.low %v2192, %v2193
    %v2198 = vunpack.c.l.s4 1966171168
    %v2199 = vunpack.c.0.s8 %v2198
    %v2200 = vlaneseq
    %v2201 = vshrl.u32 %v2200, 7
    %v2202 = vsub.s32 %v2199, %v2201
    %v2203 = vrot.slane %v2196, %v2202
    %v2205 = vunpack.c.l.s4 1966171168
    %v2206 = vunpack.c.0.s8 %v2205
    %v2207 = vlaneseq
    %v2208 = vshrl.u32 %v2207, 7
    %v2209 = vsub.s32 %v2206, %v2208
    %v2210 = vrot.slane %v2203, %v2209
    %v2212 = vsub.f32 %v2125, %v2210
    %v2213 = vmul.f32 %v2118, %v2185
    %v2214 = vmul.f32 %v2120, %v2189
    %v2216 = vlaneseq
    %v2217 = vshrl.u32 %v2216, 7
    %v2218 = vsub.s32 0, %v2217
    %v2219 = vrot.slane %v2212, %v2218
    %v2220 = vlaneseq
    %v2221 = vshrl.u32 %v2220, 7
    %v2222 = vsub.s32 1, %v2221
    %v2223 = vrot.slane %v2212, %v2222
    %v2226 = vadd.f32 %v2213, %v2219
    %v2227 = vadd.f32 %v2214, %v2223
    %v2228 = vmax.f32 %v2226, 0.0
    %v2229 = vmax.f32 %v2227, 0.0
    %s2230 = smul.u32 4, 32
    %s2231 = smul.u32 %s2230, 1
    %s2232 = sshll.u32 %s2231, 4
    %2233 = dma.done %s165, %s2232
    %v2234 = vpack.c.bf16 %v2228, %v2228
    %v2235 = vpack.c.bf16 %v2229, %v2229
    %v2236 = vld [vmem:[#allocation4] sm:$0xff]
    %v2237 = vld [vmem:[#allocation4 + $0x8] sm:$0xff]
    %v2238 = vld [vmem:[#allocation4 + $0x10] sm:$0xff]
    %v2239 = vld [vmem:[#allocation4 + $0x18] sm:$0xff]
    %v2240 = vld [vmem:[#allocation4 + $0x20] sm:$0xff]
    %v2241 = vld [vmem:[#allocation4 + $0x28] sm:$0xff]
    %v2242 = vld [vmem:[#allocation4 + $0x30] sm:$0xff]
    %v2243 = vld [vmem:[#allocation4 + $0x38] sm:$0xff]
    %v2244 = vld [vmem:[#allocation4 + $0x40] sm:$0xff]
    %v2245 = vld [vmem:[#allocation4 + $0x48] sm:$0xff]
    %v2246 = vld [vmem:[#allocation4 + $0x50] sm:$0xff]
    %v2247 = vld [vmem:[#allocation4 + $0x58] sm:$0xff]
    %v2248 = vld [vmem:[#allocation4 + $0x60] sm:$0xff]
    %v2249 = vld [vmem:[#allocation4 + $0x68] sm:$0xff]
    %v2250 = vld [vmem:[#allocation4 + $0x70] sm:$0xff]
    %v2251 = vld [vmem:[#allocation4 + $0x78] sm:$0xff]
    %v2252 = vld [vmem:[%s14] sm:$0x1]
    %v2254 = vlaneseq
    %v2255 = vshrl.u32 %v2254, 7
    %v2256 = vsub.s32 0, %v2255
    %v2257 = vrot.slane %v2252, %v2256
    %2259 = vmatprep.subr.bf16.mxu0 0
    %2260 = vmatpush1.bf16.msra.mxu0 %v2236
    %2261 = vmatprep.subr.bf16.mxu0 0
    %2262 = vmatpush1.bf16.msra.mxu0 %v2237
    %2263 = vmatprep.subr.bf16.mxu0 0
    %2264 = vmatpush1.bf16.msra.mxu0 %v2238
    %2265 = vmatprep.subr.bf16.mxu0 0
    %2266 = vmatpush1.bf16.msra.mxu0 %v2239
    %2267 = vmatprep.subr.bf16.mxu0 0
    %2268 = vmatpush1.bf16.msra.mxu0 %v2240
    %2269 = vmatprep.subr.bf16.mxu0 0
    %2270 = vmatpush1.bf16.msra.mxu0 %v2241
    %2271 = vmatprep.subr.bf16.mxu0 0
    %2272 = vmatpush1.bf16.msra.mxu0 %v2242
    %2273 = vmatprep.subr.bf16.mxu0 0
    %2274 = vmatpush1.bf16.msra.mxu0 %v2243
    %2275 = vmatprep.subr.bf16.mxu0 0
    %2276 = vmatpush1.bf16.msra.mxu0 %v2244
    %2277 = vmatprep.subr.bf16.mxu0 0
    %2278 = vmatpush1.bf16.msra.mxu0 %v2245
    %2279 = vmatprep.subr.bf16.mxu0 0
    %2280 = vmatpush1.bf16.msra.mxu0 %v2246
    %2281 = vmatprep.subr.bf16.mxu0 0
    %2282 = vmatpush1.bf16.msra.mxu0 %v2247
    %2283 = vmatprep.subr.bf16.mxu0 0
    %2284 = vmatpush1.bf16.msra.mxu0 %v2248
    %2285 = vmatprep.subr.bf16.mxu0 0
    %2286 = vmatpush1.bf16.msra.mxu0 %v2249
    %2287 = vmatprep.subr.bf16.mxu0 0
    %2288 = vmatpush1.bf16.msra.mxu0 %v2250
    %2289 = vmatprep.subr.bf16.mxu0 0
    %2290 = vmatpush1.bf16.msra.mxu0 %v2251
    %2291 = vmatprep.mubr.bf16.mxu0 %v2235
    %2292 = vmatmul.mubr.bf16.gmra.mrb[0].mxu0 %v2234
    %v2293 = vpop.f32.mrb[0].mxu0
    %v2294 = vadd.f32 %v2257, %v2293
    %v2295 = vpop.f32.mrb[0].mxu0
    %v2296 = vpop.f32.mrb[0].mxu0
    %v2297 = vpop.f32.mrb[0].mxu0
    %2298 = vdwg.mxu0
    %v2299 = vtanh.pop %v2294
    %2300 = vst [vmem:[#allocation14] sm:$0xff] %v2299
    // Predicated region
    $region70: #{tpu_custom_call.1} parent=1 // pred_check
      _
    $region71: #{tpu_custom_call.1} parent=1 // pred_check_branch
      %2302 = sbr.rel (0) target = $region73
    $region72: #{tpu_custom_call.1} parent=1 // pred_region
      %s2304 = ssub.s32 128, 128
      %2305 = vsyncadd [#allocation8], %s2304
      %s2307 = sshll.u32 [#allocation14], 4
      %s2308 = int_to_ptr.vmem [resolvable:$true] %s2307
      %2310 = dma.vmem_to_hbm [thread:$0]  %s2308, 128, %s15, [#allocation8]
    $region73: #{tpu_custom_call.1} parent=1 // pred_fallthru
      _
    // Predicated region
    $region74: #{tpu_custom_call.1} parent=1 // pred_check
      _
    $region75: #{tpu_custom_call.1} parent=1 // pred_check_branch
      %2312 = sbr.rel (0) target = $region77
    $region76: #{tpu_custom_call.1} parent=1 // pred_region
      %2313 = dma.done [#allocation8], 128
    $region77: #{tpu_custom_call.1} parent=1 // pred_fallthru
      _
    %2314 = vsyncpa [#allocation7], 1
    %2315 = vsyncpa [#allocation10], 1
    %2316 = vsyncpa [#allocation13], 1
    %2317 = vsyncpa [#allocation8], 1
  %2318 = vsyncmov [#allocation5]
  %s2319 = vpop.sfrf %2318
  %p2320 = scmp.eq.s32.totalorder %s2319, 0
  %p2321 = pneg %p2320
  %2323 = shalt.err (%p2321)
  %s2324 = scalar_lea.sflag [#allocation5], 1
  %2325 = vsyncmov %s2324
  %s2326 = vpop.sfrf %2325
  %p2327 = scmp.eq.s32.totalorder %s2326, 0
  %p2328 = pneg %p2327
  %2330 = shalt.err (%p2328)
  %s2331 = scalar_lea.sflag [#allocation5], 2
  %2332 = vsyncmov %s2331
  %s2333 = vpop.sfrf %2332
  %p2334 = scmp.eq.s32.totalorder %s2333, 0
  %p2335 = pneg %p2334
  %2337 = shalt.err (%p2335)

</llo_original>
